<compile_context>
chip_gen: v5e
topology: v5e:2x2
jax: 0.10.0
libtpu: 0.0.40
codegen_flags: <defaults>
</compile_context>

<pallas_src>
import functools

import jax
import jax.numpy as jnp
from jax.experimental import pallas as pl
from jax.experimental.pallas import tpu as pltpu


def _round_up(x, m):
    return (x + m - 1) // m * m


def _block_diag3(wv):
    """(Cin, Cout) -> block-diagonal (3*Cin, 3*Cout): lets one MXU matmul apply the
    per-component Dense to a lane-flattened (N, 3*Cin) vector feature."""
    cin, cout = wv.shape
    z = jnp.zeros((cin, cout), wv.dtype)
    return jnp.concatenate(
        [jnp.concatenate([wv, z, z], axis=1),
         jnp.concatenate([z, wv, z], axis=1),
         jnp.concatenate([z, z, wv], axis=1)], axis=0)


def _make_kernel(cout, final_silu):
    def kernel(scalar_ref, vecf_ref, wvb_ref, w1a_ref, w1b_ref, b1_ref,
               w2s_ref, b2s_ref, w2g_ref, b2g_ref, out_s_ref, out_v_ref):
        # vector_comm applied to all 3 components with a single MXU matmul against the
        # block-diagonal weight; f32 accumulation regardless of input dtype.
        comm = jnp.dot(vecf_ref[...], wvb_ref[...],
                       preferred_element_type=jnp.float32)          # (T, 3*Cout)

        # torch.norm(comm_vector, dim=-2): L2 over the x/y/z lane slices.
        sq = comm * comm
        norm = jnp.sqrt(sq[:, :cout] + sq[:, cout:2 * cout] + sq[:, 2 * cout:])

        # atom_wise_comm[0]: Dense(Cin+Cout, H) + SiLU. w1 is split in the wrapper so
        # no [scalar | norm] lane concat is needed.
        h = (jnp.dot(scalar_ref[...], w1a_ref[...], preferred_element_type=jnp.float32)
             + jnp.dot(norm, w1b_ref[...], preferred_element_type=jnp.float32)
             + b1_ref[...])
        h = h * jax.nn.sigmoid(h)                                     # SiLU (EUP/VPU)

        # atom_wise_comm[1]: scalar head + gate head.  The gate head's columns were
        # tripled in the wrapper, so g3 is already in comm's (T, 3*Cout) layout and no
        # lane broadcast is needed before the gating multiply.
        s = jnp.dot(h, w2s_ref[...], preferred_element_type=jnp.float32) + b2s_ref[...]
        if final_silu:                                                # final_activation
            s = s * jax.nn.sigmoid(s)
        g3 = jnp.dot(h, w2g_ref[...], preferred_element_type=jnp.float32) + b2g_ref[...]

        out_s_ref[...] = s.astype(out_s_ref.dtype)
        out_v_ref[...] = (g3 * comm).astype(out_v_ref.dtype)

    return kernel


@functools.partial(jax.jit, static_argnames=("block_rows", "final_silu", "out_dtype"))
def equivariant_decoder_block(scalar, vector, params, *, block_rows=1024,
                              final_silu=False, out_dtype=None):
    """scalar: (N, Cin); vector: (N, 3, Cin)  (PyTorch layout, f32 or bf16).
    params: wv (Cin, Cout), w1 (Cin+Cout, H), b1 (H,), w2 (H, 2*Cout), b2 (2*Cout,).
    Returns (scalar_out (N, Cout), vector_out (N, 3, Cout)) in out_dtype
    (default: scalar.dtype)."""
    n, cin = scalar.shape
    cout = params["wv"].shape[1]
    hdim = params["w1"].shape[1]
    out_dtype = scalar.dtype if out_dtype is None else out_dtype
    assert block_rows % 8 == 0

    # Free (contiguous) reshape — no HBM transpose/copy of the largest tensor.
    vec_flat = vector.reshape(n, 3 * cin)

    # Large row tile (kernel is HBM-bound); NO padding copy — Pallas handles the ragged
    # final block.  Rows are independent and OOB rows are never written back, so the
    # unspecified data read there is harmless.  (Do not add cross-row reductions here
    # without masking the tail.)
    tile = min(block_rows, _round_up(max(n, 1), 8))
    grid = (pl.cdiv(n, tile),)

    f32 = jnp.float32
    # Weight plumbing — tiny, done once at trace time, all weights stay VMEM-resident:
    #   * block-diag wv, pre-cast to the vector stream's dtype (no per-step input cast)
    wvb = _block_diag3(params["wv"]).astype(vector.dtype)
    #   * w1 split into scalar-head / norm-head (kills the reps lane concat)
    w1a = params["w1"][:cin].astype(f32)
    w1b = params["w1"][cin:].astype(f32)
    b1 = params["b1"].reshape(1, hdim).astype(f32)
    #   * w2 split into scalar head and gate head with tripled columns (kills gate3)
    w2s = params["w2"][:, :cout].astype(f32)
    b2s = params["b2"][:cout].reshape(1, cout).astype(f32)
    w2g = jnp.concatenate([params["w2"][:, cout:]] * 3, axis=1).astype(f32)
    b2g = jnp.concatenate([params["b2"][cout:]] * 3).reshape(1, 3 * cout).astype(f32)

    res = lambda i: (0, 0)   # weights/biases: constant index_map -> resident in VMEM
    row = lambda i: (i, 0)

    s_out, v_flat = pl.pallas_call(
        _make_kernel(cout, final_silu),
        out_shape=(jax.ShapeDtypeStruct((n, cout), out_dtype),
                   jax.ShapeDtypeStruct((n, 3 * cout), out_dtype)),
        grid=grid,
        in_specs=[
            pl.BlockSpec((tile, cin), row),
            pl.BlockSpec((tile, 3 * cin), row),
            pl.BlockSpec((3 * cin, 3 * cout), res),
            pl.BlockSpec((cin, hdim), res),
            pl.BlockSpec((cout, hdim), res),
            pl.BlockSpec((1, hdim), res),
            pl.BlockSpec((hdim, cout), res),
            pl.BlockSpec((1, cout), res),
            pl.BlockSpec((hdim, 3 * cout), res),
            pl.BlockSpec((1, 3 * cout), res),
        ],
        out_specs=(
            pl.BlockSpec((tile, cout), row),
            pl.BlockSpec((tile, 3 * cout), row),
        ),
        compiler_params=pltpu.CompilerParams(
            # TODO(synk): on v7x verify in the profile that this axis really shards
            # across both TensorCores; if not, switch to pltpu.CORE_PARALLEL / core_map.
            dimension_semantics=("parallel",),
            vmem_limit_bytes=32 * 1024 * 1024,
        ),
    )(scalar, vec_flat, wvb, w1a, w1b, b1, w2s, b2s, w2g, b2g)

    # (N, 3*Cout) -> (N, 3, Cout) is a contiguous reshape (free), unlike slicing a
    # fused slab which would cost an extra HBM pass.
    # TODO(synk): if the upstream producer can emit a pre-concatenated (N, 128) feature
    # slab [scalar | vx | vy | vz], take one lane-dense input stream instead of two.
    return s_out, v_flat.reshape(n, 3, cout)


def reference_forward(scalar, vector, params, final_silu=False):
    """Pure-JAX reference mirroring the PyTorch forward."""
    cout = params["wv"].shape[1]
    comm = jnp.einsum("nkd,do->nko", vector, params["wv"])        # (N, 3, Cout)
    norm = jnp.sqrt(jnp.sum(comm * comm, axis=-2))                # (N, Cout)
    reps = jnp.concatenate([scalar, norm], axis=-1)               # (N, Cin+Cout)
    h = jax.nn.silu(reps @ params["w1"] + params["b1"])
    y = h @ params["w2"] + params["b2"]
    s_out, gate = y[..., :cout], y[..., cout:]
    if final_silu:
        s_out = jax.nn.silu(s_out)
    return s_out, gate[..., None, :] * comm


if __name__ == "__main__":
    # Small shapes consistent with the module (in_dim=out_dim=32, hidden=64,
    # N=160 atoms).  block_rows=64 forces a 3-step grid with a RAGGED final block
    # (rows 128..159) to exercise the no-pad path on hardware.
    N, in_dim, out_dim, hidden_dim = 160, 32, 32, 64

    key = jax.random.PRNGKey(0)
    ks = jax.random.split(key, 7)

    scalar = jax.random.normal(ks[0], (N, in_dim), dtype=jnp.float32)
    vector = jax.random.normal(ks[1], (N, 3, in_dim), dtype=jnp.float32)

    params = {
        # vector_comm: Dense(in_dim, out_dim, bias=False)
        "wv": jax.random.normal(ks[2], (in_dim, out_dim), jnp.float32) * 0.1,
        # atom_wise_comm[0]: Dense(in_dim + out_dim, hidden_dim)
        "w1": jax.random.normal(ks[3], (in_dim + out_dim, hidden_dim), jnp.float32) * 0.1,
        "b1": jax.random.normal(ks[4], (hidden_dim,), jnp.float32) * 0.1,
        # atom_wise_comm[1]: Dense(hidden_dim, out_dim * 2)
        "w2": jax.random.normal(ks[5], (hidden_dim, out_dim * 2), jnp.float32) * 0.1,
        "b2": jax.random.normal(ks[6], (out_dim * 2,), jnp.float32) * 0.1,
    }

    # f32 path, multi-step grid with ragged tail.
    s_ref, v_ref = reference_forward(scalar, vector, params)
    s_out, v_out = equivariant_decoder_block(scalar, vector, params, block_rows=64)
    jax.block_until_ready((s_out, v_out))
    assert s_out.shape == (N, out_dim) and v_out.shape == (N, 3, out_dim)
    assert jnp.allclose(s_out, s_ref, rtol=1e-3, atol=1e-3)
    assert jnp.allclose(v_out, v_ref, rtol=1e-3, atol=1e-3)

    # Default (large-tile, single-block) path with the final silu — the configuration
    # of the first block of Decoder's 'derived' out_net.
    s_ref2, v_ref2 = reference_forward(scalar, vector, params, final_silu=True)
    s2, v2 = equivariant_decoder_block(scalar, vector, params, final_silu=True)
    jax.block_until_ready((s2, v2))
    assert jnp.allclose(s2, s_ref2, rtol=1e-3, atol=1e-3)
    assert jnp.allclose(v2, v_ref2, rtol=1e-3, atol=1e-3)

    # bf16 I/O path: bf16 activations in, bf16 outputs out, f32 accumulation inside —
    # the real bandwidth lever on a memory-bound kernel.
    sb = scalar.astype(jnp.bfloat16)
    vb = vector.astype(jnp.bfloat16)
    s_ref_b, v_ref_b = reference_forward(sb.astype(jnp.float32),
                                         vb.astype(jnp.float32), params)
    s_b, v_b = equivariant_decoder_block(sb, vb, params, block_rows=64)
    jax.block_until_ready((s_b, v_b))
    assert s_b.dtype == jnp.bfloat16 and v_b.dtype == jnp.bfloat16
    assert jnp.allclose(s_b.astype(jnp.float32), s_ref_b, rtol=5e-2, atol=5e-2)
    assert jnp.allclose(v_b.astype(jnp.float32), v_ref_b, rtol=5e-2, atol=5e-2)

    print("KERNEL_OK")
</pallas_src>

<mosaic_0001>
module attributes {stable_mosaic.version = 11 : i64} {
  func.func @kernel(%arg0: i32, %arg1: memref<64x32xf32, #tpu.memory_space<vmem>>, %arg2: memref<64x96xf32, #tpu.memory_space<vmem>>, %arg3: memref<96x96xf32, #tpu.memory_space<vmem>>, %arg4: memref<32x64xf32, #tpu.memory_space<vmem>>, %arg5: memref<32x64xf32, #tpu.memory_space<vmem>>, %arg6: memref<1x64xf32, #tpu.memory_space<vmem>>, %arg7: memref<64x32xf32, #tpu.memory_space<vmem>>, %arg8: memref<1x32xf32, #tpu.memory_space<vmem>>, %arg9: memref<64x96xf32, #tpu.memory_space<vmem>>, %arg10: memref<1x96xf32, #tpu.memory_space<vmem>>, %arg11: memref<64x32xf32, #tpu.memory_space<vmem>>, %arg12: memref<64x96xf32, #tpu.memory_space<vmem>>) attributes {dimension_semantics = [#tpu.dimension_semantics<parallel>], iteration_bounds = array<i64: 3>, scalar_prefetch = 0 : i64, scratch_operands = 0 : i64, tpu.core_type = #tpu.core_type<tc>, window_params = [{transform_indices = @transform_0, window_bounds = array<i64: 64, 32>}, {transform_indices = @transform_1, window_bounds = array<i64: 64, 96>}, {pipeline_mode = #tpu.pipeline_mode<synchronous>, transform_indices = @transform_2, window_bounds = array<i64: 96, 96>}, {pipeline_mode = #tpu.pipeline_mode<synchronous>, transform_indices = @transform_3, window_bounds = array<i64: 32, 64>}, {pipeline_mode = #tpu.pipeline_mode<synchronous>, transform_indices = @transform_4, window_bounds = array<i64: 32, 64>}, {pipeline_mode = #tpu.pipeline_mode<synchronous>, transform_indices = @transform_5, window_bounds = array<i64: 1, 64>}, {pipeline_mode = #tpu.pipeline_mode<synchronous>, transform_indices = @transform_6, window_bounds = array<i64: 64, 32>}, {pipeline_mode = #tpu.pipeline_mode<synchronous>, transform_indices = @transform_7, window_bounds = array<i64: 1, 32>}, {pipeline_mode = #tpu.pipeline_mode<synchronous>, transform_indices = @transform_8, window_bounds = array<i64: 64, 96>}, {pipeline_mode = #tpu.pipeline_mode<synchronous>, transform_indices = @transform_9, window_bounds = array<i64: 1, 96>}, {transform_indices = @transform_10, window_bounds = array<i64: 64, 32>}, {transform_indices = @transform_11, window_bounds = array<i64: 64, 96>}]} {
    %c0 = arith.constant 0 : index
    %c0_0 = arith.constant 0 : index
    %0 = vector.load %arg2[%c0, %c0_0] : memref<64x96xf32, #tpu.memory_space<vmem>>, vector<64x96xf32>
    %c0_1 = arith.constant 0 : index
    %c0_2 = arith.constant 0 : index
    %1 = vector.load %arg3[%c0_1, %c0_2] : memref<96x96xf32, #tpu.memory_space<vmem>>, vector<96x96xf32>
    %cst = arith.constant dense<0.000000e+00> : vector<64x96xf32>
    %2 = tpu.matmul %0, %1, %cst {dimension_numbers = #tpu.dot_dimension_numbers<[1], [0], [0], [1], [0, 0, 1, 1], [], []>} : vector<64x96xf32>, vector<96x96xf32>, vector<64x96xf32> -> vector<64x96xf32>
    %3 = arith.mulf %2, %2 : vector<64x96xf32>
    %4 = vector.extract_strided_slice %3 {offsets = [0, 0], sizes = [64, 32], strides = [1, 1]} : vector<64x96xf32> to vector<64x32xf32>
    %5 = vector.extract_strided_slice %3 {offsets = [0, 32], sizes = [64, 32], strides = [1, 1]} : vector<64x96xf32> to vector<64x32xf32>
    %6 = arith.addf %4, %5 : vector<64x32xf32>
    %7 = vector.extract_strided_slice %3 {offsets = [0, 64], sizes = [64, 32], strides = [1, 1]} : vector<64x96xf32> to vector<64x32xf32>
    %8 = arith.addf %6, %7 : vector<64x32xf32>
    %9 = math.sqrt %8 : vector<64x32xf32>
    %c0_3 = arith.constant 0 : index
    %c0_4 = arith.constant 0 : index
    %10 = vector.load %arg1[%c0_3, %c0_4] : memref<64x32xf32, #tpu.memory_space<vmem>>, vector<64x32xf32>
    %c0_5 = arith.constant 0 : index
    %c0_6 = arith.constant 0 : index
    %11 = vector.load %arg4[%c0_5, %c0_6] : memref<32x64xf32, #tpu.memory_space<vmem>>, vector<32x64xf32>
    %cst_7 = arith.constant dense<0.000000e+00> : vector<64x64xf32>
    %12 = tpu.matmul %10, %11, %cst_7 {dimension_numbers = #tpu.dot_dimension_numbers<[1], [0], [0], [1], [0, 0, 1, 1], [], []>} : vector<64x32xf32>, vector<32x64xf32>, vector<64x64xf32> -> vector<64x64xf32>
    %c0_8 = arith.constant 0 : index
    %c0_9 = arith.constant 0 : index
    %13 = vector.load %arg5[%c0_8, %c0_9] : memref<32x64xf32, #tpu.memory_space<vmem>>, vector<32x64xf32>
    %cst_10 = arith.constant dense<0.000000e+00> : vector<64x64xf32>
    %14 = tpu.matmul %9, %13, %cst_10 {dimension_numbers = #tpu.dot_dimension_numbers<[1], [0], [0], [1], [0, 0, 1, 1], [], []>} : vector<64x32xf32>, vector<32x64xf32>, vector<64x64xf32> -> vector<64x64xf32>
    %15 = arith.addf %12, %14 : vector<64x64xf32>
    %c0_11 = arith.constant 0 : index
    %c0_12 = arith.constant 0 : index
    %16 = vector.load %arg6[%c0_11, %c0_12] : memref<1x64xf32, #tpu.memory_space<vmem>>, vector<1x64xf32>
    %17 = vector.broadcast %16 : vector<1x64xf32> to vector<64x64xf32>
    %18 = arith.addf %15, %17 : vector<64x64xf32>
    %19 = arith.negf %18 : vector<64x64xf32>
    %20 = math.exp %19 : vector<64x64xf32>
    %cst_13 = arith.constant 1.000000e+00 : f32
    %21 = vector.broadcast %cst_13 : f32 to vector<64x64xf32>
    %22 = arith.addf %21, %20 : vector<64x64xf32>
    %23 = arith.divf %21, %22 : vector<64x64xf32>
    %24 = arith.mulf %18, %23 : vector<64x64xf32>
    %c0_14 = arith.constant 0 : index
    %c0_15 = arith.constant 0 : index
    %25 = vector.load %arg7[%c0_14, %c0_15] : memref<64x32xf32, #tpu.memory_space<vmem>>, vector<64x32xf32>
    %cst_16 = arith.constant dense<0.000000e+00> : vector<64x32xf32>
    %26 = tpu.matmul %24, %25, %cst_16 {dimension_numbers = #tpu.dot_dimension_numbers<[1], [0], [0], [1], [0, 0, 1, 1], [], []>} : vector<64x64xf32>, vector<64x32xf32>, vector<64x32xf32> -> vector<64x32xf32>
    %c0_17 = arith.constant 0 : index
    %c0_18 = arith.constant 0 : index
    %27 = vector.load %arg8[%c0_17, %c0_18] : memref<1x32xf32, #tpu.memory_space<vmem>>, vector<1x32xf32>
    %28 = vector.broadcast %27 : vector<1x32xf32> to vector<64x32xf32>
    %29 = arith.addf %26, %28 : vector<64x32xf32>
    %c0_19 = arith.constant 0 : index
    %c0_20 = arith.constant 0 : index
    %30 = vector.load %arg9[%c0_19, %c0_20] : memref<64x96xf32, #tpu.memory_space<vmem>>, vector<64x96xf32>
    %cst_21 = arith.constant dense<0.000000e+00> : vector<64x96xf32>
    %31 = tpu.matmul %24, %30, %cst_21 {dimension_numbers = #tpu.dot_dimension_numbers<[1], [0], [0], [1], [0, 0, 1, 1], [], []>} : vector<64x64xf32>, vector<64x96xf32>, vector<64x96xf32> -> vector<64x96xf32>
    %c0_22 = arith.constant 0 : index
    %c0_23 = arith.constant 0 : index
    %32 = vector.load %arg10[%c0_22, %c0_23] : memref<1x96xf32, #tpu.memory_space<vmem>>, vector<1x96xf32>
    %33 = vector.broadcast %32 : vector<1x96xf32> to vector<64x96xf32>
    %34 = arith.addf %31, %33 : vector<64x96xf32>
    %c0_24 = arith.constant 0 : index
    %c0_25 = arith.constant 0 : index
    %35 = vector.load %arg11[%c0_24, %c0_25] : memref<64x32xf32, #tpu.memory_space<vmem>>, vector<64x32xf32>
    tpu.vector_store %arg11[%c0_24, %c0_25], %29 {strides = array<i32>} : memref<64x32xf32, #tpu.memory_space<vmem>>, vector<64x32xf32>,
    %36 = arith.mulf %34, %2 : vector<64x96xf32>
    %c0_26 = arith.constant 0 : index
    %c0_27 = arith.constant 0 : index
    %37 = vector.load %arg12[%c0_26, %c0_27] : memref<64x96xf32, #tpu.memory_space<vmem>>, vector<64x96xf32>
    tpu.vector_store %arg12[%c0_26, %c0_27], %36 {strides = array<i32>} : memref<64x96xf32, #tpu.memory_space<vmem>>, vector<64x96xf32>,
    return
  }
  func.func @transform_0(%arg0: i32) -> (i32, i32) {
    %c0_i32 = arith.constant 0 : i32
    %c0_i32_0 = arith.constant 0 : i32
    return %arg0, %c0_i32 : i32, i32
  }
  func.func @transform_1(%arg0: i32) -> (i32, i32) {
    %c0_i32 = arith.constant 0 : i32
    %c0_i32_0 = arith.constant 0 : i32
    return %arg0, %c0_i32 : i32, i32
  }
  func.func @transform_2(%arg0: i32) -> (i32, i32) {
    %c0_i32 = arith.constant 0 : i32
    %c0_i32_0 = arith.constant 0 : i32
    %c0_i32_1 = arith.constant 0 : i32
    return %c0_i32, %c0_i32_0 : i32, i32
  }
  func.func @transform_3(%arg0: i32) -> (i32, i32) {
    %c0_i32 = arith.constant 0 : i32
    %c0_i32_0 = arith.constant 0 : i32
    %c0_i32_1 = arith.constant 0 : i32
    return %c0_i32, %c0_i32_0 : i32, i32
  }
  func.func @transform_4(%arg0: i32) -> (i32, i32) {
    %c0_i32 = arith.constant 0 : i32
    %c0_i32_0 = arith.constant 0 : i32
    %c0_i32_1 = arith.constant 0 : i32
    return %c0_i32, %c0_i32_0 : i32, i32
  }
  func.func @transform_5(%arg0: i32) -> (i32, i32) {
    %c0_i32 = arith.constant 0 : i32
    %c0_i32_0 = arith.constant 0 : i32
    %c0_i32_1 = arith.constant 0 : i32
    return %c0_i32, %c0_i32_0 : i32, i32
  }
  func.func @transform_6(%arg0: i32) -> (i32, i32) {
    %c0_i32 = arith.constant 0 : i32
    %c0_i32_0 = arith.constant 0 : i32
    %c0_i32_1 = arith.constant 0 : i32
    return %c0_i32, %c0_i32_0 : i32, i32
  }
  func.func @transform_7(%arg0: i32) -> (i32, i32) {
    %c0_i32 = arith.constant 0 : i32
    %c0_i32_0 = arith.constant 0 : i32
    %c0_i32_1 = arith.constant 0 : i32
    return %c0_i32, %c0_i32_0 : i32, i32
  }
  func.func @transform_8(%arg0: i32) -> (i32, i32) {
    %c0_i32 = arith.constant 0 : i32
    %c0_i32_0 = arith.constant 0 : i32
    %c0_i32_1 = arith.constant 0 : i32
    return %c0_i32, %c0_i32_0 : i32, i32
  }
  func.func @transform_9(%arg0: i32) -> (i32, i32) {
    %c0_i32 = arith.constant 0 : i32
    %c0_i32_0 = arith.constant 0 : i32
    %c0_i32_1 = arith.constant 0 : i32
    return %c0_i32, %c0_i32_0 : i32, i32
  }
  func.func @transform_10(%arg0: i32) -> (i32, i32) {
    %c0_i32 = arith.constant 0 : i32
    %c0_i32_0 = arith.constant 0 : i32
    return %arg0, %c0_i32 : i32, i32
  }
  func.func @transform_11(%arg0: i32) -> (i32, i32) {
    %c0_i32 = arith.constant 0 : i32
    %c0_i32_0 = arith.constant 0 : i32
    return %arg0, %c0_i32 : i32, i32
  }
}

</mosaic_0001>

<llo_original>
// kernel: equivariant_decoder_block.1
$region0: #{equivariant_decoder_block.1}
  #allocation0 [shape = 'u32[]', space=smem, size = 0x4, offset = 0x4, fixed_abs, tag = 'smem constant byte address 0x4 - core index']
  #allocation1 [shape = 'u32[72,128]{1,0:T(1,128)}', space=vmem, size = 0x9000, scoped, tag = 'internal scratch']
  %s0 = inlined_call_operand.vmem [shape: f32[160,32], index: 0, kind: input, shape index: {}]
  %s1 = inlined_call_operand.vmem [shape: f32[160,96], index: 1, kind: input, shape index: {}]
  %s2 = inlined_call_operand.vmem [shape: f32[96,96], index: 2, kind: input, shape index: {}]
  %s3 = inlined_call_operand.vmem [shape: f32[32,64], index: 3, kind: input, shape index: {}]
  %s4 = inlined_call_operand.vmem [shape: f32[32,64], index: 4, kind: input, shape index: {}]
  %s5 = inlined_call_operand.vmem [shape: f32[1,64], index: 5, kind: input, shape index: {}]
  %s6 = inlined_call_operand.vmem [shape: f32[64,32], index: 6, kind: input, shape index: {}]
  %s7 = inlined_call_operand.vmem [shape: f32[1,32], index: 7, kind: input, shape index: {}]
  %s8 = inlined_call_operand.vmem [shape: f32[64,96], index: 8, kind: input, shape index: {}]
  %s9 = inlined_call_operand.vmem [shape: f32[1,96], index: 9, kind: input, shape index: {}]
  %s10 = inlined_call_operand.vmem [shape: f32[160,32], index: 10, kind: output, shape index: {0}]
  %s11 = inlined_call_operand.vmem [shape: f32[160,96], index: 11, kind: output, shape index: {1}]
  %12 = xla_tuple %s10, %s11
  %s13 = sld [smem:[#allocation0]]
  $region177: #{equivariant_decoder_block.1} parent=0
    _
  %s15 = ssub.s32 1, %s13
  %s16 = scalar_select 0, %s15, %s13
  $region1: #{equivariant_decoder_block.1} parent=0
    #allocation2 [shape = 'u8[65536]{0}', space=vmem, size = 0x10000, scoped, tag = 'output window, operand 0']
    #allocation3 [shape = 'u8[65536]{0}', space=vmem, size = 0x10000, scoped, tag = 'output window, operand 1']
    loop: start=0, step=1, limit=5
    $region2: #{equivariant_decoder_block.1} parent=1 // loop_pre_header
      _
    $region3: #{equivariant_decoder_block.1} parent=1 // loop_header
      %s18 = sphi 0, %s22
      %p19 = scmp.ge.s32.totalorder %s18, 5
      %s28 = sphi 0, %s30
      %s31 = sphi 0, %s28
      %s32 = sphi 0, %s31
      %s48 = sphi 0, %s32
      %s54 = sphi 0, %s56
      %s57 = sphi 0, %s54
      %s58 = sphi 0, %s57
      %s74 = sphi 0, %s58
      %s78 = sphi 0, %s78
      %s80 = sphi 0, %s78
      %s81 = sphi 0, %s80
      %s95 = sphi 0, %s81
      %s99 = sphi 0, %s99
      %s101 = sphi 0, %s99
      %s102 = sphi 0, %s101
      %s116 = sphi 0, %s102
      %s120 = sphi 0, %s120
      %s122 = sphi 0, %s120
      %s123 = sphi 0, %s122
      %s137 = sphi 0, %s123
      %s141 = sphi 0, %s141
      %s143 = sphi 0, %s141
      %s144 = sphi 0, %s143
      %s158 = sphi 0, %s144
      %s162 = sphi 0, %s162
      %s164 = sphi 0, %s162
      %s165 = sphi 0, %s164
      %s179 = sphi 0, %s165
      %s183 = sphi 0, %s183
      %s185 = sphi 0, %s183
      %s186 = sphi 0, %s185
      %s200 = sphi 0, %s186
      %s204 = sphi 0, %s204
      %s206 = sphi 0, %s204
      %s207 = sphi 0, %s206
      %s221 = sphi 0, %s207
      %s225 = sphi 0, %s225
      %s227 = sphi 0, %s225
      %s228 = sphi 0, %s227
      %s242 = sphi 0, %s228
      %s248 = sphi 0, %s250
      %s251 = sphi 0, %s248
      %s252 = sphi 0, %s251
      %s268 = sphi 0, %s252
      %s274 = sphi 0, %s276
      %s277 = sphi 0, %s274
      %s278 = sphi 0, %s277
      %s294 = sphi 0, %s278
    $region4: #{equivariant_decoder_block.1} parent=1 // loop_header_branch
      %21 = sbr.rel (%p19) target = $region8
    $region5: #{equivariant_decoder_block.1} parent=1 // loop_body
      %s23 = ssub.s32 %s18, 1
      %s24 = ssub.s32 %s18, 2
      %s25 = sadd.s32 %s18, 1
      %s26 = ssub.s32 %s18, %s25
      %p27 = scmp.eq.s32.totalorder %s26, 0
      %s29 = sadd.s32 %s28, 1
      %s30 = scalar_select %p27, %s28, %s29
      %p33 = pneg %p27
      %p34 = scmp.eq.s32.totalorder %s18, 2
      %p35 = por %p33, %p34
      %p36 = scmp.ne.s32.totalorder %s28, %s31
      %p37 = scmp.eq.s32.totalorder %s18, 0
      %p38 = por %p36, %p37
      %p39 = scmp.ne.s32.totalorder %s28, %s31
      %p40 = scmp.eq.s32.totalorder %s23, 2
      %p41 = por %p39, %p40
      %p42 = scmp.ne.s32.totalorder %s31, %s32
      %p43 = scmp.eq.s32.totalorder %s23, 0
      %p44 = por %p42, %p43
      %p45 = scmp.ne.s32.totalorder %s31, %s32
      %p46 = scmp.eq.s32.totalorder %s24, 2
      %p47 = por %p45, %p46
      %p49 = scmp.ne.s32.totalorder %s32, %s48
      %p50 = scmp.eq.s32.totalorder %s24, 0
      %p51 = por %p49, %p50
      %s52 = ssub.s32 %s18, %s25
      %p53 = scmp.eq.s32.totalorder %s52, 0
      %s55 = sadd.s32 %s54, 1
      %s56 = scalar_select %p53, %s54, %s55
      %p59 = pneg %p53
      %p60 = scmp.eq.s32.totalorder %s18, 2
      %p61 = por %p59, %p60
      %p62 = scmp.ne.s32.totalorder %s54, %s57
      %p63 = scmp.eq.s32.totalorder %s18, 0
      %p64 = por %p62, %p63
      %p65 = scmp.ne.s32.totalorder %s54, %s57
      %p66 = scmp.eq.s32.totalorder %s23, 2
      %p67 = por %p65, %p66
      %p68 = scmp.ne.s32.totalorder %s57, %s58
      %p69 = scmp.eq.s32.totalorder %s23, 0
      %p70 = por %p68, %p69
      %p71 = scmp.ne.s32.totalorder %s57, %s58
      %p72 = scmp.eq.s32.totalorder %s24, 2
      %p73 = por %p71, %p72
      %p75 = scmp.ne.s32.totalorder %s58, %s74
      %p76 = scmp.eq.s32.totalorder %s24, 0
      %p77 = por %p75, %p76
      %s79 = sadd.s32 %s78, 1
      %p82 = scmp.eq.s32.totalorder %s18, 2
      %p83 = scmp.ne.s32.totalorder %s78, %s80
      %p84 = scmp.eq.s32.totalorder %s18, 0
      %p85 = por %p83, %p84
      %p86 = scmp.ne.s32.totalorder %s78, %s80
      %p87 = scmp.eq.s32.totalorder %s23, 2
      %p88 = por %p86, %p87
      %p89 = scmp.ne.s32.totalorder %s80, %s81
      %p90 = scmp.eq.s32.totalorder %s23, 0
      %p91 = por %p89, %p90
      %p92 = scmp.ne.s32.totalorder %s80, %s81
      %p93 = scmp.eq.s32.totalorder %s24, 2
      %p94 = por %p92, %p93
      %p96 = scmp.ne.s32.totalorder %s81, %s95
      %p97 = scmp.eq.s32.totalorder %s24, 0
      %p98 = por %p96, %p97
      %s100 = sadd.s32 %s99, 1
      %p103 = scmp.eq.s32.totalorder %s18, 2
      %p104 = scmp.ne.s32.totalorder %s99, %s101
      %p105 = scmp.eq.s32.totalorder %s18, 0
      %p106 = por %p104, %p105
      %p107 = scmp.ne.s32.totalorder %s99, %s101
      %p108 = scmp.eq.s32.totalorder %s23, 2
      %p109 = por %p107, %p108
      %p110 = scmp.ne.s32.totalorder %s101, %s102
      %p111 = scmp.eq.s32.totalorder %s23, 0
      %p112 = por %p110, %p111
      %p113 = scmp.ne.s32.totalorder %s101, %s102
      %p114 = scmp.eq.s32.totalorder %s24, 2
      %p115 = por %p113, %p114
      %p117 = scmp.ne.s32.totalorder %s102, %s116
      %p118 = scmp.eq.s32.totalorder %s24, 0
      %p119 = por %p117, %p118
      %s121 = sadd.s32 %s120, 1
      %p124 = scmp.eq.s32.totalorder %s18, 2
      %p125 = scmp.ne.s32.totalorder %s120, %s122
      %p126 = scmp.eq.s32.totalorder %s18, 0
      %p127 = por %p125, %p126
      %p128 = scmp.ne.s32.totalorder %s120, %s122
      %p129 = scmp.eq.s32.totalorder %s23, 2
      %p130 = por %p128, %p129
      %p131 = scmp.ne.s32.totalorder %s122, %s123
      %p132 = scmp.eq.s32.totalorder %s23, 0
      %p133 = por %p131, %p132
      %p134 = scmp.ne.s32.totalorder %s122, %s123
      %p135 = scmp.eq.s32.totalorder %s24, 2
      %p136 = por %p134, %p135
      %p138 = scmp.ne.s32.totalorder %s123, %s137
      %p139 = scmp.eq.s32.totalorder %s24, 0
      %p140 = por %p138, %p139
      %s142 = sadd.s32 %s141, 1
      %p145 = scmp.eq.s32.totalorder %s18, 2
      %p146 = scmp.ne.s32.totalorder %s141, %s143
      %p147 = scmp.eq.s32.totalorder %s18, 0
      %p148 = por %p146, %p147
      %p149 = scmp.ne.s32.totalorder %s141, %s143
      %p150 = scmp.eq.s32.totalorder %s23, 2
      %p151 = por %p149, %p150
      %p152 = scmp.ne.s32.totalorder %s143, %s144
      %p153 = scmp.eq.s32.totalorder %s23, 0
      %p154 = por %p152, %p153
      %p155 = scmp.ne.s32.totalorder %s143, %s144
      %p156 = scmp.eq.s32.totalorder %s24, 2
      %p157 = por %p155, %p156
      %p159 = scmp.ne.s32.totalorder %s144, %s158
      %p160 = scmp.eq.s32.totalorder %s24, 0
      %p161 = por %p159, %p160
      %s163 = sadd.s32 %s162, 1
      %p166 = scmp.eq.s32.totalorder %s18, 2
      %p167 = scmp.ne.s32.totalorder %s162, %s164
      %p168 = scmp.eq.s32.totalorder %s18, 0
      %p169 = por %p167, %p168
      %p170 = scmp.ne.s32.totalorder %s162, %s164
      %p171 = scmp.eq.s32.totalorder %s23, 2
      %p172 = por %p170, %p171
      %p173 = scmp.ne.s32.totalorder %s164, %s165
      %p174 = scmp.eq.s32.totalorder %s23, 0
      %p175 = por %p173, %p174
      %p176 = scmp.ne.s32.totalorder %s164, %s165
      %p177 = scmp.eq.s32.totalorder %s24, 2
      %p178 = por %p176, %p177
      %p180 = scmp.ne.s32.totalorder %s165, %s179
      %p181 = scmp.eq.s32.totalorder %s24, 0
      %p182 = por %p180, %p181
      %s184 = sadd.s32 %s183, 1
      %p187 = scmp.eq.s32.totalorder %s18, 2
      %p188 = scmp.ne.s32.totalorder %s183, %s185
      %p189 = scmp.eq.s32.totalorder %s18, 0
      %p190 = por %p188, %p189
      %p191 = scmp.ne.s32.totalorder %s183, %s185
      %p192 = scmp.eq.s32.totalorder %s23, 2
      %p193 = por %p191, %p192
      %p194 = scmp.ne.s32.totalorder %s185, %s186
      %p195 = scmp.eq.s32.totalorder %s23, 0
      %p196 = por %p194, %p195
      %p197 = scmp.ne.s32.totalorder %s185, %s186
      %p198 = scmp.eq.s32.totalorder %s24, 2
      %p199 = por %p197, %p198
      %p201 = scmp.ne.s32.totalorder %s186, %s200
      %p202 = scmp.eq.s32.totalorder %s24, 0
      %p203 = por %p201, %p202
      %s205 = sadd.s32 %s204, 1
      %p208 = scmp.eq.s32.totalorder %s18, 2
      %p209 = scmp.ne.s32.totalorder %s204, %s206
      %p210 = scmp.eq.s32.totalorder %s18, 0
      %p211 = por %p209, %p210
      %p212 = scmp.ne.s32.totalorder %s204, %s206
      %p213 = scmp.eq.s32.totalorder %s23, 2
      %p214 = por %p212, %p213
      %p215 = scmp.ne.s32.totalorder %s206, %s207
      %p216 = scmp.eq.s32.totalorder %s23, 0
      %p217 = por %p215, %p216
      %p218 = scmp.ne.s32.totalorder %s206, %s207
      %p219 = scmp.eq.s32.totalorder %s24, 2
      %p220 = por %p218, %p219
      %p222 = scmp.ne.s32.totalorder %s207, %s221
      %p223 = scmp.eq.s32.totalorder %s24, 0
      %p224 = por %p222, %p223
      %s226 = sadd.s32 %s225, 1
      %p229 = scmp.eq.s32.totalorder %s18, 2
      %p230 = scmp.ne.s32.totalorder %s225, %s227
      %p231 = scmp.eq.s32.totalorder %s18, 0
      %p232 = por %p230, %p231
      %p233 = scmp.ne.s32.totalorder %s225, %s227
      %p234 = scmp.eq.s32.totalorder %s23, 2
      %p235 = por %p233, %p234
      %p236 = scmp.ne.s32.totalorder %s227, %s228
      %p237 = scmp.eq.s32.totalorder %s23, 0
      %p238 = por %p236, %p237
      %p239 = scmp.ne.s32.totalorder %s227, %s228
      %p240 = scmp.eq.s32.totalorder %s24, 2
      %p241 = por %p239, %p240
      %p243 = scmp.ne.s32.totalorder %s228, %s242
      %p244 = scmp.eq.s32.totalorder %s24, 0
      %p245 = por %p243, %p244
      %s246 = ssub.s32 %s18, %s25
      %p247 = scmp.eq.s32.totalorder %s246, 0
      %s249 = sadd.s32 %s248, 1
      %s250 = scalar_select %p247, %s248, %s249
      %p253 = pneg %p247
      %p254 = scmp.eq.s32.totalorder %s18, 2
      %p255 = por %p253, %p254
      %p256 = scmp.ne.s32.totalorder %s248, %s251
      %p257 = scmp.eq.s32.totalorder %s18, 0
      %p258 = por %p256, %p257
      %p259 = scmp.ne.s32.totalorder %s248, %s251
      %p260 = scmp.eq.s32.totalorder %s23, 2
      %p261 = por %p259, %p260
      %p262 = scmp.ne.s32.totalorder %s251, %s252
      %p263 = scmp.eq.s32.totalorder %s23, 0
      %p264 = por %p262, %p263
      %p265 = scmp.ne.s32.totalorder %s251, %s252
      %p266 = scmp.eq.s32.totalorder %s24, 2
      %p267 = por %p265, %p266
      %p269 = scmp.ne.s32.totalorder %s252, %s268
      %p270 = scmp.eq.s32.totalorder %s24, 0
      %p271 = por %p269, %p270
      %s272 = ssub.s32 %s18, %s25
      %p273 = scmp.eq.s32.totalorder %s272, 0
      %s275 = sadd.s32 %s274, 1
      %s276 = scalar_select %p273, %s274, %s275
      %p279 = pneg %p273
      %p280 = scmp.eq.s32.totalorder %s18, 2
      %p281 = por %p279, %p280
      %p282 = scmp.ne.s32.totalorder %s274, %s277
      %p283 = scmp.eq.s32.totalorder %s18, 0
      %p284 = por %p282, %p283
      %p285 = scmp.ne.s32.totalorder %s274, %s277
      %p286 = scmp.eq.s32.totalorder %s23, 2
      %p287 = por %p285, %p286
      %p288 = scmp.ne.s32.totalorder %s277, %s278
      %p289 = scmp.eq.s32.totalorder %s23, 0
      %p290 = por %p288, %p289
      %p291 = scmp.ne.s32.totalorder %s277, %s278
      %p292 = scmp.eq.s32.totalorder %s24, 2
      %p293 = por %p291, %p292
      %p295 = scmp.ne.s32.totalorder %s278, %s294
      %p296 = scmp.eq.s32.totalorder %s24, 0
      %p297 = por %p295, %p296
      %p298 = scmp.le.s32.totalorder 1, %s18
      %p299 = scmp.lt.s32.totalorder %s18, 4
      %p300 = pnand %p298, %p299
      %p301 = pneg %p300
      // Predicated region
      $region9: #{equivariant_decoder_block.1} parent=5 // pred_check
        _
      $region10: #{equivariant_decoder_block.1} parent=5 // pred_check_branch
        %303 = sbr.rel (%p300) target = $region12
      $region11: #{equivariant_decoder_block.1} parent=5 // pred_region
        %s304 = ssub.s32 %s18, 1
        // Predicated region
        $region13: #{equivariant_decoder_block.1} parent=11 // pred_check
          %p305 = pneg %p91
        $region14: #{equivariant_decoder_block.1} parent=11 // pred_check_branch
          %307 = sbr.rel (%p305) target = $region16
        $region15: #{equivariant_decoder_block.1} parent=11 // pred_region
          _
        $region16: #{equivariant_decoder_block.1} parent=11 // pred_fallthru
          _
        // Predicated region
        $region17: #{equivariant_decoder_block.1} parent=11 // pred_check
          %p308 = pneg %p112
        $region18: #{equivariant_decoder_block.1} parent=11 // pred_check_branch
          %310 = sbr.rel (%p308) target = $region20
        $region19: #{equivariant_decoder_block.1} parent=11 // pred_region
          _
        $region20: #{equivariant_decoder_block.1} parent=11 // pred_fallthru
          _
        // Predicated region
        $region21: #{equivariant_decoder_block.1} parent=11 // pred_check
          %p311 = pneg %p133
        $region22: #{equivariant_decoder_block.1} parent=11 // pred_check_branch
          %313 = sbr.rel (%p311) target = $region24
        $region23: #{equivariant_decoder_block.1} parent=11 // pred_region
          _
        $region24: #{equivariant_decoder_block.1} parent=11 // pred_fallthru
          _
        // Predicated region
        $region25: #{equivariant_decoder_block.1} parent=11 // pred_check
          %p314 = pneg %p154
        $region26: #{equivariant_decoder_block.1} parent=11 // pred_check_branch
          %316 = sbr.rel (%p314) target = $region28
        $region27: #{equivariant_decoder_block.1} parent=11 // pred_region
          _
        $region28: #{equivariant_decoder_block.1} parent=11 // pred_fallthru
          _
        // Predicated region
        $region29: #{equivariant_decoder_block.1} parent=11 // pred_check
          %p317 = pneg %p175
        $region30: #{equivariant_decoder_block.1} parent=11 // pred_check_branch
          %319 = sbr.rel (%p317) target = $region32
        $region31: #{equivariant_decoder_block.1} parent=11 // pred_region
          _
        $region32: #{equivariant_decoder_block.1} parent=11 // pred_fallthru
          _
        // Predicated region
        $region33: #{equivariant_decoder_block.1} parent=11 // pred_check
          %p320 = pneg %p196
        $region34: #{equivariant_decoder_block.1} parent=11 // pred_check_branch
          %322 = sbr.rel (%p320) target = $region36
        $region35: #{equivariant_decoder_block.1} parent=11 // pred_region
          _
        $region36: #{equivariant_decoder_block.1} parent=11 // pred_fallthru
          _
        // Predicated region
        $region37: #{equivariant_decoder_block.1} parent=11 // pred_check
          %p323 = pneg %p217
        $region38: #{equivariant_decoder_block.1} parent=11 // pred_check_branch
          %325 = sbr.rel (%p323) target = $region40
        $region39: #{equivariant_decoder_block.1} parent=11 // pred_region
          _
        $region40: #{equivariant_decoder_block.1} parent=11 // pred_fallthru
          _
        // Predicated region
        $region41: #{equivariant_decoder_block.1} parent=11 // pred_check
          %p326 = pneg %p238
        $region42: #{equivariant_decoder_block.1} parent=11 // pred_check_branch
          %328 = sbr.rel (%p326) target = $region44
        $region43: #{equivariant_decoder_block.1} parent=11 // pred_region
          _
        $region44: #{equivariant_decoder_block.1} parent=11 // pred_fallthru
          _
      $region12: #{equivariant_decoder_block.1} parent=5 // pred_fallthru
        _
      %p329 = scmp.lt.s32.totalorder %s18, 3
      // Predicated region
      $region45: #{equivariant_decoder_block.1} parent=5 // pred_check
        %p330 = pneg %p329
      $region46: #{equivariant_decoder_block.1} parent=5 // pred_check_branch
        %332 = sbr.rel (%p330) target = $region48
      $region47: #{equivariant_decoder_block.1} parent=5 // pred_region
        // Predicated region
        $region49: #{equivariant_decoder_block.1} parent=47 // pred_check
          %p333 = pneg %p38
        $region50: #{equivariant_decoder_block.1} parent=47 // pred_check_branch
          %335 = sbr.rel (%p333) target = $region52
        $region51: #{equivariant_decoder_block.1} parent=47 // pred_region
          %s336 = smul.u32 8, %s18
          %s337 = ssub.s32 20, %s336
          %p338 = scmp.lt.s32.totalorder %s337, 8
          %s339 = scalar_select %p338, %s337, 8
          %s340 = smul.u32 8, %s339
          %p341 = scmp.lt.s32.totalorder %s336, 19
          %s342 = scalar_select %p341, %s336, 19
          %s343 = smul.addr %s342, 8
          %s344 = scalar_lea.vmem %s0, %s343
          %s345 = smul.u32 8, %s18
          %s346 = ssub.s32 20, %s345
          %p347 = scmp.lt.s32.totalorder %s346, 8
          %s348 = scalar_select %p347, %s346, 8
          %s349 = smul.u32 8, %s348
        $region52: #{equivariant_decoder_block.1} parent=47 // pred_fallthru
          _
        // Predicated region
        $region53: #{equivariant_decoder_block.1} parent=47 // pred_check
          %p350 = pneg %p64
        $region54: #{equivariant_decoder_block.1} parent=47 // pred_check_branch
          %352 = sbr.rel (%p350) target = $region56
        $region55: #{equivariant_decoder_block.1} parent=47 // pred_region
          %s353 = smul.u32 8, %s18
          %s354 = ssub.s32 20, %s353
          %p355 = scmp.lt.s32.totalorder %s354, 8
          %s356 = scalar_select %p355, %s354, 8
          %s357 = smul.u32 8, %s356
          %p358 = scmp.lt.s32.totalorder %s353, 19
          %s359 = scalar_select %p358, %s353, 19
          %s360 = smul.addr %s359, 8
          %s361 = scalar_lea.vmem %s1, %s360
          %s362 = smul.u32 8, %s18
          %s363 = ssub.s32 20, %s362
          %p364 = scmp.lt.s32.totalorder %s363, 8
          %s365 = scalar_select %p364, %s363, 8
          %s366 = smul.u32 8, %s365
        $region56: #{equivariant_decoder_block.1} parent=47 // pred_fallthru
          _
      $region48: #{equivariant_decoder_block.1} parent=5 // pred_fallthru
        _
      %p367 = scmp.le.s32.totalorder 1, %s18
      %p368 = scmp.lt.s32.totalorder %s18, 4
      %p369 = pnand %p367, %p368
      %p370 = pneg %p369
      // Predicated region
      $region57: #{equivariant_decoder_block.1} parent=5 // pred_check
        _
      $region58: #{equivariant_decoder_block.1} parent=5 // pred_check_branch
        %372 = sbr.rel (%p369) target = $region60
      $region59: #{equivariant_decoder_block.1} parent=5 // pred_region
        %s373 = ssub.s32 %s18, 1
        %s374 = smul.u32 8, %s23
        %s375 = ssub.s32 20, %s374
        %p376 = scmp.lt.s32.totalorder %s375, 8
        %s377 = scalar_select %p376, %s375, 8
        %s378 = smul.u32 8, %s377
        %p379 = scmp.lt.s32.totalorder %s374, 19
        %s380 = scalar_select %p379, %s374, 19
        %s381 = smul.addr %s380, 8
        %s382 = scalar_lea.vmem %s0, %s381
        %p383 = pneg %p44
        %p384 = pneg %p41
        %s385 = smul.u32 8, %s23
        %s386 = ssub.s32 20, %s385
        %p387 = scmp.lt.s32.totalorder %s386, 8
        %s388 = scalar_select %p387, %s386, 8
        %s389 = smul.u32 8, %s388
        %p390 = scmp.lt.s32.totalorder %s385, 19
        %s391 = scalar_select %p390, %s385, 19
        %s392 = smul.addr %s391, 8
        %s393 = scalar_lea.vmem %s1, %s392
        %p394 = pneg %p70
        %p395 = pneg %p67
        %p396 = pneg %p91
        %p397 = pneg %p88
        %p398 = pneg %p112
        %p399 = pneg %p109
        %p400 = pneg %p133
        %p401 = pneg %p130
        %p402 = pneg %p154
        %p403 = pneg %p151
        %p404 = pneg %p175
        %p405 = pneg %p172
        %p406 = pneg %p196
        %p407 = pneg %p193
        %p408 = pneg %p217
        %p409 = pneg %p214
        %p410 = pneg %p238
        %p411 = pneg %p235
        %p412 = pneg %p264
        %p413 = pneg %p261
        %s414 = sand.u32 %s251, 1
        %s415 = sand.u32 %s251, 1
        %s416 = smul.addr %s415, 64
        %s417 = scalar_lea.vmem [#allocation2], %s416
        %p418 = pneg %p290
        %p419 = pneg %p287
        %s420 = sand.u32 %s277, 1
        %s421 = sand.u32 %s277, 1
        %s422 = smul.addr %s421, 64
        %s423 = scalar_lea.vmem [#allocation3], %s422
        %s424 = smul.u32 8, %s23
        %s425 = ssub.s32 20, %s424
        %p426 = scmp.lt.s32.totalorder %s425, 8
        %s427 = scalar_select %p426, %s425, 8
        %s428 = smul.u32 8, %s427
        %p429 = scmp.lt.s32.totalorder %s424, 19
        %s430 = scalar_select %p429, %s424, 19
        %s431 = smul.addr %s430, 8
        %s432 = scalar_lea.vmem %s0, %s431
        %s433 = smul.u32 8, %s23
        %s434 = ssub.s32 20, %s433
        %p435 = scmp.lt.s32.totalorder %s434, 8
        %s436 = scalar_select %p435, %s434, 8
        %s437 = smul.u32 8, %s436
        %s438 = smul.u32 8, %s23
        %s439 = ssub.s32 20, %s438
        %p440 = scmp.lt.s32.totalorder %s439, 8
        %s441 = scalar_select %p440, %s439, 8
        %s442 = smul.u32 8, %s441
        %p443 = scmp.lt.s32.totalorder %s438, 19
        %s444 = scalar_select %p443, %s438, 19
        %s445 = smul.addr %s444, 8
        %s446 = scalar_lea.vmem %s1, %s445
        %s447 = smul.u32 8, %s23
        %s448 = ssub.s32 20, %s447
        %p449 = scmp.lt.s32.totalorder %s448, 8
        %s450 = scalar_select %p449, %s448, 8
        %s451 = smul.u32 8, %s450
        %s452 = smul.u32 8, %s23
        %s453 = ssub.s32 20, %s452
        %p454 = scmp.lt.s32.totalorder %s453, 8
        %s455 = scalar_select %p454, %s453, 8
        %s456 = smul.u32 8, %s455
        %s457 = smul.u32 8, %s23
        %s458 = ssub.s32 20, %s457
        %p459 = scmp.lt.s32.totalorder %s458, 8
        %s460 = scalar_select %p459, %s458, 8
        %s461 = smul.u32 8, %s460
        %v462 = vld [vmem:[%s446] sm:$0xff]
        %v463 = vld [vmem:[%s446 + $0x8] sm:$0xff]
        %v464 = vld [vmem:[%s446 + $0x10] sm:$0xff]
        %v465 = vld [vmem:[%s446 + $0x18] sm:$0xff]
        %v466 = vld [vmem:[%s446 + $0x20] sm:$0xff]
        %v467 = vld [vmem:[%s446 + $0x28] sm:$0xff]
        %v468 = vld [vmem:[%s446 + $0x30] sm:$0xff]
        %v469 = vld [vmem:[%s446 + $0x38] sm:$0xff]
        %v470 = vld [vmem:[%s2] sm:$0xff]
        %v471 = vld [vmem:[%s2 + $0x8] sm:$0xff]
        %v472 = vld [vmem:[%s2 + $0x10] sm:$0xff]
        %v473 = vld [vmem:[%s2 + $0x18] sm:$0xff]
        %v474 = vld [vmem:[%s2 + $0x20] sm:$0xff]
        %v475 = vld [vmem:[%s2 + $0x28] sm:$0xff]
        %v476 = vld [vmem:[%s2 + $0x30] sm:$0xff]
        %v477 = vld [vmem:[%s2 + $0x38] sm:$0xff]
        %v478 = vld [vmem:[%s2 + $0x40] sm:$0xff]
        %v479 = vld [vmem:[%s2 + $0x48] sm:$0xff]
        %v480 = vld [vmem:[%s2 + $0x50] sm:$0xff]
        %v481 = vld [vmem:[%s2 + $0x58] sm:$0xff]
        %vm482 = vcmask 785408
        %v484 = vsel %vm482, %v462, 0
        %v487 = vsel %vm482, %v463, 0
        %v490 = vsel %vm482, %v464, 0
        %v493 = vsel %vm482, %v465, 0
        %v496 = vsel %vm482, %v466, 0
        %v499 = vsel %vm482, %v467, 0
        %v502 = vsel %vm482, %v468, 0
        %v505 = vsel %vm482, %v469, 0
        %507 = vmatpush.msra.mxu0 0.0
        %508 = vmatpush.msra.mxu0 0.0
        %509 = vmatpush.msra.mxu0 0.0
        %510 = vmatpush.msra.mxu0 0.0
        %511 = vmatpush.msra.mxu0 %v481
        %512 = vmatpush.msra.mxu0 %v480
        %513 = vmatpush.msra.mxu0 %v479
        %514 = vmatpush.msra.mxu0 %v478
        %515 = vmatpush.msra.mxu0 %v477
        %516 = vmatpush.msra.mxu0 %v476
        %517 = vmatpush.msra.mxu0 %v475
        %518 = vmatpush.msra.mxu0 %v474
        %519 = vmatpush.msra.mxu0 %v473
        %520 = vmatpush.msra.mxu0 %v472
        %521 = vmatpush.msra.mxu0 %v471
        %522 = vmatpush.msra.mxu0 %v470
        %523 = vmatmul.f32.gmra.mxu0 %v484
        %v524 = vpop.f32.mrf.mxu0
        %v525 = vadd.f32 0.0, %v524
        %526 = vmatmul.f32.gmra.mxu0 %v487
        %v527 = vpop.f32.mrf.mxu0
        %v528 = vadd.f32 0.0, %v527
        %529 = vmatmul.f32.gmra.mxu0 %v490
        %v530 = vpop.f32.mrf.mxu0
        %v531 = vadd.f32 0.0, %v530
        %532 = vmatmul.f32.gmra.mxu0 %v493
        %v533 = vpop.f32.mrf.mxu0
        %v534 = vadd.f32 0.0, %v533
        %535 = vmatmul.f32.gmra.mxu0 %v496
        %v536 = vpop.f32.mrf.mxu0
        %v537 = vadd.f32 0.0, %v536
        %538 = vmatmul.f32.gmra.mxu0 %v499
        %v539 = vpop.f32.mrf.mxu0
        %v540 = vadd.f32 0.0, %v539
        %541 = vmatmul.f32.gmra.mxu0 %v502
        %v542 = vpop.f32.mrf.mxu0
        %v543 = vadd.f32 0.0, %v542
        %544 = vmatmul.f32.gmra.mxu0 %v505
        %v545 = vpop.f32.mrf.mxu0
        %v546 = vadd.f32 0.0, %v545
        %547 = vdwg.mxu0
        %v548 = vmul.f32 %v525, %v525
        %v549 = vmul.f32 %v528, %v528
        %v550 = vmul.f32 %v531, %v531
        %v551 = vmul.f32 %v534, %v534
        %v552 = vmul.f32 %v537, %v537
        %v553 = vmul.f32 %v540, %v540
        %v554 = vmul.f32 %v543, %v543
        %v555 = vmul.f32 %v546, %v546
        %564 = vrot.lane.b32.xlu0 %v548, 96
        %v565 = vpop.permute.xlu0 %564
        %566 = vrot.lane.b32.xlu0 %v549, 96
        %v567 = vpop.permute.xlu0 %566
        %568 = vrot.lane.b32.xlu0 %v550, 96
        %v569 = vpop.permute.xlu0 %568
        %570 = vrot.lane.b32.xlu0 %v551, 96
        %v571 = vpop.permute.xlu0 %570
        %572 = vrot.lane.b32.xlu0 %v552, 96
        %v573 = vpop.permute.xlu0 %572
        %574 = vrot.lane.b32.xlu0 %v553, 96
        %v575 = vpop.permute.xlu0 %574
        %576 = vrot.lane.b32.xlu0 %v554, 96
        %v577 = vpop.permute.xlu0 %576
        %578 = vrot.lane.b32.xlu0 %v555, 96
        %v579 = vpop.permute.xlu0 %578
        %v588 = vadd.f32 %v548, %v565
        %v589 = vadd.f32 %v549, %v567
        %v590 = vadd.f32 %v550, %v569
        %v591 = vadd.f32 %v551, %v571
        %v592 = vadd.f32 %v552, %v573
        %v593 = vadd.f32 %v553, %v575
        %v594 = vadd.f32 %v554, %v577
        %v595 = vadd.f32 %v555, %v579
        %596 = vrot.lane.b32.xlu0 %v548, 64
        %v597 = vpop.permute.xlu0 %596
        %598 = vrot.lane.b32.xlu0 %v549, 64
        %v599 = vpop.permute.xlu0 %598
        %600 = vrot.lane.b32.xlu0 %v550, 64
        %v601 = vpop.permute.xlu0 %600
        %602 = vrot.lane.b32.xlu0 %v551, 64
        %v603 = vpop.permute.xlu0 %602
        %604 = vrot.lane.b32.xlu0 %v552, 64
        %v605 = vpop.permute.xlu0 %604
        %606 = vrot.lane.b32.xlu0 %v553, 64
        %v607 = vpop.permute.xlu0 %606
        %608 = vrot.lane.b32.xlu0 %v554, 64
        %v609 = vpop.permute.xlu0 %608
        %610 = vrot.lane.b32.xlu0 %v555, 64
        %v611 = vpop.permute.xlu0 %610
        %v620 = vadd.f32 %v588, %v597
        %v621 = vadd.f32 %v589, %v599
        %v622 = vadd.f32 %v590, %v601
        %v623 = vadd.f32 %v591, %v603
        %v624 = vadd.f32 %v592, %v605
        %v625 = vadd.f32 %v593, %v607
        %v626 = vadd.f32 %v594, %v609
        %v627 = vadd.f32 %v595, %v611
        %v628 = vrsqrt.pop %v620
        %v629 = vmul.f32 %v628, %v620
        %v630 = vmul.f32 %v629, %v628
        %v631 = vmul.f32 0.5, %v630
        %v632 = vsub.f32 1.5, %v631
        %v633 = vmul.f32 %v628, %v632
        %v634 = vmul.f32 %v620, %v633
        %vm635 = vcmp.eq.f32.partialorder %v620, inf
        %v636 = vsel %vm635, %v620, %v634
        %vm637 = vcmp.eq.f32.partialorder %v620, 0.0
        %v638 = vand.u32 %v620, 2147483648
        %v639 = vsel %vm637, %v638, %v636
        %v640 = vrsqrt.pop %v621
        %v641 = vmul.f32 %v640, %v621
        %v642 = vmul.f32 %v641, %v640
        %v643 = vmul.f32 0.5, %v642
        %v644 = vsub.f32 1.5, %v643
        %v645 = vmul.f32 %v640, %v644
        %v646 = vmul.f32 %v621, %v645
        %vm647 = vcmp.eq.f32.partialorder %v621, inf
        %v648 = vsel %vm647, %v621, %v646
        %vm649 = vcmp.eq.f32.partialorder %v621, 0.0
        %v650 = vand.u32 %v621, 2147483648
        %v651 = vsel %vm649, %v650, %v648
        %v652 = vrsqrt.pop %v622
        %v653 = vmul.f32 %v652, %v622
        %v654 = vmul.f32 %v653, %v652
        %v655 = vmul.f32 0.5, %v654
        %v656 = vsub.f32 1.5, %v655
        %v657 = vmul.f32 %v652, %v656
        %v658 = vmul.f32 %v622, %v657
        %vm659 = vcmp.eq.f32.partialorder %v622, inf
        %v660 = vsel %vm659, %v622, %v658
        %vm661 = vcmp.eq.f32.partialorder %v622, 0.0
        %v662 = vand.u32 %v622, 2147483648
        %v663 = vsel %vm661, %v662, %v660
        %v664 = vrsqrt.pop %v623
        %v665 = vmul.f32 %v664, %v623
        %v666 = vmul.f32 %v665, %v664
        %v667 = vmul.f32 0.5, %v666
        %v668 = vsub.f32 1.5, %v667
        %v669 = vmul.f32 %v664, %v668
        %v670 = vmul.f32 %v623, %v669
        %vm671 = vcmp.eq.f32.partialorder %v623, inf
        %v672 = vsel %vm671, %v623, %v670
        %vm673 = vcmp.eq.f32.partialorder %v623, 0.0
        %v674 = vand.u32 %v623, 2147483648
        %v675 = vsel %vm673, %v674, %v672
        %v676 = vrsqrt.pop %v624
        %v677 = vmul.f32 %v676, %v624
        %v678 = vmul.f32 %v677, %v676
        %v679 = vmul.f32 0.5, %v678
        %v680 = vsub.f32 1.5, %v679
        %v681 = vmul.f32 %v676, %v680
        %v682 = vmul.f32 %v624, %v681
        %vm683 = vcmp.eq.f32.partialorder %v624, inf
        %v684 = vsel %vm683, %v624, %v682
        %vm685 = vcmp.eq.f32.partialorder %v624, 0.0
        %v686 = vand.u32 %v624, 2147483648
        %v687 = vsel %vm685, %v686, %v684
        %v688 = vrsqrt.pop %v625
        %v689 = vmul.f32 %v688, %v625
        %v690 = vmul.f32 %v689, %v688
        %v691 = vmul.f32 0.5, %v690
        %v692 = vsub.f32 1.5, %v691
        %v693 = vmul.f32 %v688, %v692
        %v694 = vmul.f32 %v625, %v693
        %vm695 = vcmp.eq.f32.partialorder %v625, inf
        %v696 = vsel %vm695, %v625, %v694
        %vm697 = vcmp.eq.f32.partialorder %v625, 0.0
        %v698 = vand.u32 %v625, 2147483648
        %v699 = vsel %vm697, %v698, %v696
        %v700 = vrsqrt.pop %v626
        %v701 = vmul.f32 %v700, %v626
        %v702 = vmul.f32 %v701, %v700
        %v703 = vmul.f32 0.5, %v702
        %v704 = vsub.f32 1.5, %v703
        %v705 = vmul.f32 %v700, %v704
        %v706 = vmul.f32 %v626, %v705
        %vm707 = vcmp.eq.f32.partialorder %v626, inf
        %v708 = vsel %vm707, %v626, %v706
        %vm709 = vcmp.eq.f32.partialorder %v626, 0.0
        %v710 = vand.u32 %v626, 2147483648
        %v711 = vsel %vm709, %v710, %v708
        %v712 = vrsqrt.pop %v627
        %v713 = vmul.f32 %v712, %v627
        %v714 = vmul.f32 %v713, %v712
        %v715 = vmul.f32 0.5, %v714
        %v716 = vsub.f32 1.5, %v715
        %v717 = vmul.f32 %v712, %v716
        %v718 = vmul.f32 %v627, %v717
        %vm719 = vcmp.eq.f32.partialorder %v627, inf
        %v720 = vsel %vm719, %v627, %v718
        %vm721 = vcmp.eq.f32.partialorder %v627, 0.0
        %v722 = vand.u32 %v627, 2147483648
        %v723 = vsel %vm721, %v722, %v720
        %v724 = vld [vmem:[%s432] sm:$0xff]
        %v725 = vld [vmem:[%s432 + $0x8] sm:$0xff]
        %v726 = vld [vmem:[%s432 + $0x10] sm:$0xff]
        %v727 = vld [vmem:[%s432 + $0x18] sm:$0xff]
        %v728 = vld [vmem:[%s432 + $0x20] sm:$0xff]
        %v729 = vld [vmem:[%s432 + $0x28] sm:$0xff]
        %v730 = vld [vmem:[%s432 + $0x30] sm:$0xff]
        %v731 = vld [vmem:[%s432 + $0x38] sm:$0xff]
        %v732 = vld [vmem:[%s3] sm:$0xff]
        %v733 = vld [vmem:[%s3 + $0x8] sm:$0xff]
        %v734 = vld [vmem:[%s3 + $0x10] sm:$0xff]
        %v735 = vld [vmem:[%s3 + $0x18] sm:$0xff]
        %v736 = vld [vmem:[%s4] sm:$0xff]
        %v737 = vld [vmem:[%s4 + $0x8] sm:$0xff]
        %v738 = vld [vmem:[%s4 + $0x10] sm:$0xff]
        %v739 = vld [vmem:[%s4 + $0x18] sm:$0xff]
        %vm740 = vcmask 261120
        %v742 = vsel %vm740, %v639, 0
        %v745 = vsel %vm740, %v651, 0
        %v748 = vsel %vm740, %v663, 0
        %v751 = vsel %vm740, %v675, 0
        %v754 = vsel %vm740, %v687, 0
        %v757 = vsel %vm740, %v699, 0
        %v760 = vsel %vm740, %v711, 0
        %v763 = vsel %vm740, %v723, 0
        %765 = vmatpush.msra.mxu0 0.0
        %766 = vmatpush.msra.mxu0 0.0
        %767 = vmatpush.msra.mxu0 0.0
        %768 = vmatpush.msra.mxu0 0.0
        %769 = vmatpush.msra.mxu0 0.0
        %770 = vmatpush.msra.mxu0 0.0
        %771 = vmatpush.msra.mxu0 0.0
        %772 = vmatpush.msra.mxu0 0.0
        %773 = vmatpush.msra.mxu0 0.0
        %774 = vmatpush.msra.mxu0 0.0
        %775 = vmatpush.msra.mxu0 0.0
        %776 = vmatpush.msra.mxu0 0.0
        %777 = vmatpush.msra.mxu0 %v739
        %778 = vmatpush.msra.mxu0 %v738
        %779 = vmatpush.msra.mxu0 %v737
        %780 = vmatpush.msra.mxu0 %v736
        %781 = vmatmul.f32.gmra.mxu0 %v742
        %v782 = vpop.f32.mrf.mxu0
        %v783 = vadd.f32 0.0, %v782
        %784 = vmatmul.f32.gmra.mxu0 %v745
        %v785 = vpop.f32.mrf.mxu0
        %v786 = vadd.f32 0.0, %v785
        %787 = vmatmul.f32.gmra.mxu0 %v748
        %v788 = vpop.f32.mrf.mxu0
        %v789 = vadd.f32 0.0, %v788
        %790 = vmatmul.f32.gmra.mxu0 %v751
        %v791 = vpop.f32.mrf.mxu0
        %v792 = vadd.f32 0.0, %v791
        %793 = vmatmul.f32.gmra.mxu0 %v754
        %v794 = vpop.f32.mrf.mxu0
        %v795 = vadd.f32 0.0, %v794
        %796 = vmatmul.f32.gmra.mxu0 %v757
        %v797 = vpop.f32.mrf.mxu0
        %v798 = vadd.f32 0.0, %v797
        %799 = vmatmul.f32.gmra.mxu0 %v760
        %v800 = vpop.f32.mrf.mxu0
        %v801 = vadd.f32 0.0, %v800
        %802 = vmatmul.f32.gmra.mxu0 %v763
        %v803 = vpop.f32.mrf.mxu0
        %v804 = vadd.f32 0.0, %v803
        %805 = vdwg.mxu0
        %v807 = vsel %vm740, %v724, 0
        %v810 = vsel %vm740, %v725, 0
        %v813 = vsel %vm740, %v726, 0
        %v816 = vsel %vm740, %v727, 0
        %v819 = vsel %vm740, %v728, 0
        %v822 = vsel %vm740, %v729, 0
        %v825 = vsel %vm740, %v730, 0
        %v828 = vsel %vm740, %v731, 0
        %830 = vmatpush.msra.mxu0 0.0
        %831 = vmatpush.msra.mxu0 0.0
        %832 = vmatpush.msra.mxu0 0.0
        %833 = vmatpush.msra.mxu0 0.0
        %834 = vmatpush.msra.mxu0 0.0
        %835 = vmatpush.msra.mxu0 0.0
        %836 = vmatpush.msra.mxu0 0.0
        %837 = vmatpush.msra.mxu0 0.0
        %838 = vmatpush.msra.mxu0 0.0
        %839 = vmatpush.msra.mxu0 0.0
        %840 = vmatpush.msra.mxu0 0.0
        %841 = vmatpush.msra.mxu0 0.0
        %842 = vmatpush.msra.mxu0 %v735
        %843 = vmatpush.msra.mxu0 %v734
        %844 = vmatpush.msra.mxu0 %v733
        %845 = vmatpush.msra.mxu0 %v732
        %846 = vmatmul.f32.gmra.mxu0 %v807
        %v847 = vpop.f32.mrf.mxu0
        %v848 = vadd.f32 %v783, %v847
        %849 = vmatmul.f32.gmra.mxu0 %v810
        %v850 = vpop.f32.mrf.mxu0
        %v851 = vadd.f32 %v786, %v850
        %852 = vmatmul.f32.gmra.mxu0 %v813
        %v853 = vpop.f32.mrf.mxu0
        %v854 = vadd.f32 %v789, %v853
        %855 = vmatmul.f32.gmra.mxu0 %v816
        %v856 = vpop.f32.mrf.mxu0
        %v857 = vadd.f32 %v792, %v856
        %858 = vmatmul.f32.gmra.mxu0 %v819
        %v859 = vpop.f32.mrf.mxu0
        %v860 = vadd.f32 %v795, %v859
        %861 = vmatmul.f32.gmra.mxu0 %v822
        %v862 = vpop.f32.mrf.mxu0
        %v863 = vadd.f32 %v798, %v862
        %864 = vmatmul.f32.gmra.mxu0 %v825
        %v865 = vpop.f32.mrf.mxu0
        %v866 = vadd.f32 %v801, %v865
        %867 = vmatmul.f32.gmra.mxu0 %v828
        %v868 = vpop.f32.mrf.mxu0
        %v869 = vadd.f32 %v804, %v868
        %870 = vdwg.mxu0
        %v871 = vld [vmem:[%s5] sm:$0x1]
        %v873 = vperm.slane %v871, 0
        %v875 = vadd.f32 %v848, %v873
        %v876 = vadd.f32 %v851, %v873
        %v877 = vadd.f32 %v854, %v873
        %v878 = vadd.f32 %v857, %v873
        %v879 = vadd.f32 %v860, %v873
        %v880 = vadd.f32 %v863, %v873
        %v881 = vadd.f32 %v866, %v873
        %v882 = vadd.f32 %v869, %v873
        %v883 = vxor.u32 %v875, 2147483648
        %v884 = vxor.u32 %v876, 2147483648
        %v885 = vxor.u32 %v877, 2147483648
        %v886 = vxor.u32 %v878, 2147483648
        %v887 = vxor.u32 %v879, 2147483648
        %v888 = vxor.u32 %v880, 2147483648
        %v889 = vxor.u32 %v881, 2147483648
        %v890 = vxor.u32 %v882, 2147483648
        %v891 = vmul.f32 %v883, 1.442695
        %v892 = vpow.pop %v891
        %v893 = vmul.f32 %v884, 1.442695
        %v894 = vpow.pop %v893
        %v895 = vmul.f32 %v885, 1.442695
        %v896 = vpow.pop %v895
        %v897 = vmul.f32 %v886, 1.442695
        %v898 = vpow.pop %v897
        %v899 = vmul.f32 %v887, 1.442695
        %v900 = vpow.pop %v899
        %v901 = vmul.f32 %v888, 1.442695
        %v902 = vpow.pop %v901
        %v903 = vmul.f32 %v889, 1.442695
        %v904 = vpow.pop %v903
        %v905 = vmul.f32 %v890, 1.442695
        %v906 = vpow.pop %v905
        %v907 = vadd.f32 %v892, 1.0
        %v908 = vadd.f32 %v894, 1.0
        %v909 = vadd.f32 %v896, 1.0
        %v910 = vadd.f32 %v898, 1.0
        %v911 = vadd.f32 %v900, 1.0
        %v912 = vadd.f32 %v902, 1.0
        %v913 = vadd.f32 %v904, 1.0
        %v914 = vadd.f32 %v906, 1.0
        %v915 = vrcp.pop %v907
        %v916 = vmul.f32 %v907, %v915
        %v917 = vsub.f32 1.0, %v916
        %v918 = vmul.f32 %v915, %v917
        %v919 = vadd.f32 %v915, %v918
        %vm920 = vweird.f32 %v907
        %vm921 = vweird.f32 %v915
        %vm922 = vmor %vm920, %vm921
        %v923 = vsel %vm922, %v915, %v919
        %v924 = vand.u32 2147483647, %v907
        %vm925 = vcmp.eq.f32.partialorder %v924, 8.507059e+37
        %v926 = vand.u32 %v907, 2147483648
        %v927 = vor.u32 1.1754944e-38, %v926
        %v928 = vsel %vm925, %v927, %v923
        %v929 = vmul.f32 1.0, %v928
        %v930 = vrcp.pop %v908
        %v931 = vmul.f32 %v908, %v930
        %v932 = vsub.f32 1.0, %v931
        %v933 = vmul.f32 %v930, %v932
        %v934 = vadd.f32 %v930, %v933
        %vm935 = vweird.f32 %v908
        %vm936 = vweird.f32 %v930
        %vm937 = vmor %vm935, %vm936
        %v938 = vsel %vm937, %v930, %v934
        %v939 = vand.u32 2147483647, %v908
        %vm940 = vcmp.eq.f32.partialorder %v939, 8.507059e+37
        %v941 = vand.u32 %v908, 2147483648
        %v942 = vor.u32 1.1754944e-38, %v941
        %v943 = vsel %vm940, %v942, %v938
        %v944 = vmul.f32 1.0, %v943
        %v945 = vrcp.pop %v909
        %v946 = vmul.f32 %v909, %v945
        %v947 = vsub.f32 1.0, %v946
        %v948 = vmul.f32 %v945, %v947
        %v949 = vadd.f32 %v945, %v948
        %vm950 = vweird.f32 %v909
        %vm951 = vweird.f32 %v945
        %vm952 = vmor %vm950, %vm951
        %v953 = vsel %vm952, %v945, %v949
        %v954 = vand.u32 2147483647, %v909
        %vm955 = vcmp.eq.f32.partialorder %v954, 8.507059e+37
        %v956 = vand.u32 %v909, 2147483648
        %v957 = vor.u32 1.1754944e-38, %v956
        %v958 = vsel %vm955, %v957, %v953
        %v959 = vmul.f32 1.0, %v958
        %v960 = vrcp.pop %v910
        %v961 = vmul.f32 %v910, %v960
        %v962 = vsub.f32 1.0, %v961
        %v963 = vmul.f32 %v960, %v962
        %v964 = vadd.f32 %v960, %v963
        %vm965 = vweird.f32 %v910
        %vm966 = vweird.f32 %v960
        %vm967 = vmor %vm965, %vm966
        %v968 = vsel %vm967, %v960, %v964
        %v969 = vand.u32 2147483647, %v910
        %vm970 = vcmp.eq.f32.partialorder %v969, 8.507059e+37
        %v971 = vand.u32 %v910, 2147483648
        %v972 = vor.u32 1.1754944e-38, %v971
        %v973 = vsel %vm970, %v972, %v968
        %v974 = vmul.f32 1.0, %v973
        %v975 = vrcp.pop %v911
        %v976 = vmul.f32 %v911, %v975
        %v977 = vsub.f32 1.0, %v976
        %v978 = vmul.f32 %v975, %v977
        %v979 = vadd.f32 %v975, %v978
        %vm980 = vweird.f32 %v911
        %vm981 = vweird.f32 %v975
        %vm982 = vmor %vm980, %vm981
        %v983 = vsel %vm982, %v975, %v979
        %v984 = vand.u32 2147483647, %v911
        %vm985 = vcmp.eq.f32.partialorder %v984, 8.507059e+37
        %v986 = vand.u32 %v911, 2147483648
        %v987 = vor.u32 1.1754944e-38, %v986
        %v988 = vsel %vm985, %v987, %v983
        %v989 = vmul.f32 1.0, %v988
        %v990 = vrcp.pop %v912
        %v991 = vmul.f32 %v912, %v990
        %v992 = vsub.f32 1.0, %v991
        %v993 = vmul.f32 %v990, %v992
        %v994 = vadd.f32 %v990, %v993
        %vm995 = vweird.f32 %v912
        %vm996 = vweird.f32 %v990
        %vm997 = vmor %vm995, %vm996
        %v998 = vsel %vm997, %v990, %v994
        %v999 = vand.u32 2147483647, %v912
        %vm1000 = vcmp.eq.f32.partialorder %v999, 8.507059e+37
        %v1001 = vand.u32 %v912, 2147483648
        %v1002 = vor.u32 1.1754944e-38, %v1001
        %v1003 = vsel %vm1000, %v1002, %v998
        %v1004 = vmul.f32 1.0, %v1003
        %v1005 = vrcp.pop %v913
        %v1006 = vmul.f32 %v913, %v1005
        %v1007 = vsub.f32 1.0, %v1006
        %v1008 = vmul.f32 %v1005, %v1007
        %v1009 = vadd.f32 %v1005, %v1008
        %vm1010 = vweird.f32 %v913
        %vm1011 = vweird.f32 %v1005
        %vm1012 = vmor %vm1010, %vm1011
        %v1013 = vsel %vm1012, %v1005, %v1009
        %v1014 = vand.u32 2147483647, %v913
        %vm1015 = vcmp.eq.f32.partialorder %v1014, 8.507059e+37
        %v1016 = vand.u32 %v913, 2147483648
        %v1017 = vor.u32 1.1754944e-38, %v1016
        %v1018 = vsel %vm1015, %v1017, %v1013
        %v1019 = vmul.f32 1.0, %v1018
        %v1020 = vrcp.pop %v914
        %v1021 = vmul.f32 %v914, %v1020
        %v1022 = vsub.f32 1.0, %v1021
        %v1023 = vmul.f32 %v1020, %v1022
        %v1024 = vadd.f32 %v1020, %v1023
        %vm1025 = vweird.f32 %v914
        %vm1026 = vweird.f32 %v1020
        %vm1027 = vmor %vm1025, %vm1026
        %v1028 = vsel %vm1027, %v1020, %v1024
        %v1029 = vand.u32 2147483647, %v914
        %vm1030 = vcmp.eq.f32.partialorder %v1029, 8.507059e+37
        %v1031 = vand.u32 %v914, 2147483648
        %v1032 = vor.u32 1.1754944e-38, %v1031
        %v1033 = vsel %vm1030, %v1032, %v1028
        %v1034 = vmul.f32 1.0, %v1033
        %v1035 = vmul.f32 %v875, %v929
        %v1036 = vmul.f32 %v876, %v944
        %v1037 = vmul.f32 %v877, %v959
        %v1038 = vmul.f32 %v878, %v974
        %v1039 = vmul.f32 %v879, %v989
        %v1040 = vmul.f32 %v880, %v1004
        %v1041 = vmul.f32 %v881, %v1019
        %v1042 = vmul.f32 %v882, %v1034
        %v1043 = vld [vmem:[%s6] sm:$0xff]
        %v1044 = vld [vmem:[%s6 + $0x8] sm:$0xff]
        %v1045 = vld [vmem:[%s6 + $0x10] sm:$0xff]
        %v1046 = vld [vmem:[%s6 + $0x18] sm:$0xff]
        %v1047 = vld [vmem:[%s6 + $0x20] sm:$0xff]
        %v1048 = vld [vmem:[%s6 + $0x28] sm:$0xff]
        %v1049 = vld [vmem:[%s6 + $0x30] sm:$0xff]
        %v1050 = vld [vmem:[%s6 + $0x38] sm:$0xff]
        %v1051 = vld [vmem:[%s7] sm:$0x1]
        %v1053 = vperm.slane %v1051, 0
        %vm1055 = vcmask 523264
        %v1057 = vsel %vm1055, %v1035, 0
        %v1060 = vsel %vm1055, %v1036, 0
        %v1063 = vsel %vm1055, %v1037, 0
        %v1066 = vsel %vm1055, %v1038, 0
        %v1069 = vsel %vm1055, %v1039, 0
        %v1072 = vsel %vm1055, %v1040, 0
        %v1075 = vsel %vm1055, %v1041, 0
        %v1078 = vsel %vm1055, %v1042, 0
        %1080 = vmatpush.msra.mxu0 0.0
        %1081 = vmatpush.msra.mxu0 0.0
        %1082 = vmatpush.msra.mxu0 0.0
        %1083 = vmatpush.msra.mxu0 0.0
        %1084 = vmatpush.msra.mxu0 0.0
        %1085 = vmatpush.msra.mxu0 0.0
        %1086 = vmatpush.msra.mxu0 0.0
        %1087 = vmatpush.msra.mxu0 0.0
        %1088 = vmatpush.msra.mxu0 %v1050
        %1089 = vmatpush.msra.mxu0 %v1049
        %1090 = vmatpush.msra.mxu0 %v1048
        %1091 = vmatpush.msra.mxu0 %v1047
        %1092 = vmatpush.msra.mxu0 %v1046
        %1093 = vmatpush.msra.mxu0 %v1045
        %1094 = vmatpush.msra.mxu0 %v1044
        %1095 = vmatpush.msra.mxu0 %v1043
        %1096 = vmatmul.f32.gmra.mxu0 %v1057
        %v1097 = vpop.f32.mrf.mxu0
        %v1098 = vadd.f32 %v1053, %v1097
        %1099 = vmatmul.f32.gmra.mxu0 %v1060
        %v1100 = vpop.f32.mrf.mxu0
        %v1101 = vadd.f32 %v1053, %v1100
        %1102 = vmatmul.f32.gmra.mxu0 %v1063
        %v1103 = vpop.f32.mrf.mxu0
        %v1104 = vadd.f32 %v1053, %v1103
        %1105 = vmatmul.f32.gmra.mxu0 %v1066
        %v1106 = vpop.f32.mrf.mxu0
        %v1107 = vadd.f32 %v1053, %v1106
        %1108 = vmatmul.f32.gmra.mxu0 %v1069
        %v1109 = vpop.f32.mrf.mxu0
        %v1110 = vadd.f32 %v1053, %v1109
        %1111 = vmatmul.f32.gmra.mxu0 %v1072
        %v1112 = vpop.f32.mrf.mxu0
        %v1113 = vadd.f32 %v1053, %v1112
        %1114 = vmatmul.f32.gmra.mxu0 %v1075
        %v1115 = vpop.f32.mrf.mxu0
        %v1116 = vadd.f32 %v1053, %v1115
        %1117 = vmatmul.f32.gmra.mxu0 %v1078
        %v1118 = vpop.f32.mrf.mxu0
        %v1119 = vadd.f32 %v1053, %v1118
        %1120 = vdwg.mxu0
        %v1121 = vld [vmem:[%s8] sm:$0xff]
        %v1122 = vld [vmem:[%s8 + $0x8] sm:$0xff]
        %v1123 = vld [vmem:[%s8 + $0x10] sm:$0xff]
        %v1124 = vld [vmem:[%s8 + $0x18] sm:$0xff]
        %v1125 = vld [vmem:[%s8 + $0x20] sm:$0xff]
        %v1126 = vld [vmem:[%s8 + $0x28] sm:$0xff]
        %v1127 = vld [vmem:[%s8 + $0x30] sm:$0xff]
        %v1128 = vld [vmem:[%s8 + $0x38] sm:$0xff]
        %v1129 = vld [vmem:[%s9] sm:$0x1]
        %v1131 = vperm.slane %v1129, 0
        %1133 = vmatpush.msra.mxu0 0.0
        %1134 = vmatpush.msra.mxu0 0.0
        %1135 = vmatpush.msra.mxu0 0.0
        %1136 = vmatpush.msra.mxu0 0.0
        %1137 = vmatpush.msra.mxu0 0.0
        %1138 = vmatpush.msra.mxu0 0.0
        %1139 = vmatpush.msra.mxu0 0.0
        %1140 = vmatpush.msra.mxu0 0.0
        %1141 = vmatpush.msra.mxu0 %v1128
        %1142 = vmatpush.msra.mxu0 %v1127
        %1143 = vmatpush.msra.mxu0 %v1126
        %1144 = vmatpush.msra.mxu0 %v1125
        %1145 = vmatpush.msra.mxu0 %v1124
        %1146 = vmatpush.msra.mxu0 %v1123
        %1147 = vmatpush.msra.mxu0 %v1122
        %1148 = vmatpush.msra.mxu0 %v1121
        %1149 = vmatmul.f32.gmra.mxu0 %v1057
        %v1150 = vpop.f32.mrf.mxu0
        %v1151 = vadd.f32 %v1131, %v1150
        %1152 = vmatmul.f32.gmra.mxu0 %v1060
        %v1153 = vpop.f32.mrf.mxu0
        %v1154 = vadd.f32 %v1131, %v1153
        %1155 = vmatmul.f32.gmra.mxu0 %v1063
        %v1156 = vpop.f32.mrf.mxu0
        %v1157 = vadd.f32 %v1131, %v1156
        %1158 = vmatmul.f32.gmra.mxu0 %v1066
        %v1159 = vpop.f32.mrf.mxu0
        %v1160 = vadd.f32 %v1131, %v1159
        %1161 = vmatmul.f32.gmra.mxu0 %v1069
        %v1162 = vpop.f32.mrf.mxu0
        %v1163 = vadd.f32 %v1131, %v1162
        %1164 = vmatmul.f32.gmra.mxu0 %v1072
        %v1165 = vpop.f32.mrf.mxu0
        %v1166 = vadd.f32 %v1131, %v1165
        %1167 = vmatmul.f32.gmra.mxu0 %v1075
        %v1168 = vpop.f32.mrf.mxu0
        %v1169 = vadd.f32 %v1131, %v1168
        %1170 = vmatmul.f32.gmra.mxu0 %v1078
        %v1171 = vpop.f32.mrf.mxu0
        %v1172 = vadd.f32 %v1131, %v1171
        %1173 = vdwg.mxu0
        %1174 = vst.msk [vmem:[%s417] sm:$0xff] %vm740, %v1098
        %1175 = vst.msk [vmem:[%s417 + $0x8] sm:$0xff] %vm740, %v1101
        %1176 = vst.msk [vmem:[%s417 + $0x10] sm:$0xff] %vm740, %v1104
        %1177 = vst.msk [vmem:[%s417 + $0x18] sm:$0xff] %vm740, %v1107
        %1178 = vst.msk [vmem:[%s417 + $0x20] sm:$0xff] %vm740, %v1110
        %1179 = vst.msk [vmem:[%s417 + $0x28] sm:$0xff] %vm740, %v1113
        %1180 = vst.msk [vmem:[%s417 + $0x30] sm:$0xff] %vm740, %v1116
        %1181 = vst.msk [vmem:[%s417 + $0x38] sm:$0xff] %vm740, %v1119
        %v1182 = vmul.f32 %v1151, %v525
        %v1183 = vmul.f32 %v1154, %v528
        %v1184 = vmul.f32 %v1157, %v531
        %v1185 = vmul.f32 %v1160, %v534
        %v1186 = vmul.f32 %v1163, %v537
        %v1187 = vmul.f32 %v1166, %v540
        %v1188 = vmul.f32 %v1169, %v543
        %v1189 = vmul.f32 %v1172, %v546
        %1190 = vst.msk [vmem:[%s423] sm:$0xff] %vm482, %v1182
        %1191 = vst.msk [vmem:[%s423 + $0x8] sm:$0xff] %vm482, %v1183
        %1192 = vst.msk [vmem:[%s423 + $0x10] sm:$0xff] %vm482, %v1184
        %1193 = vst.msk [vmem:[%s423 + $0x18] sm:$0xff] %vm482, %v1185
        %1194 = vst.msk [vmem:[%s423 + $0x20] sm:$0xff] %vm482, %v1186
        %1195 = vst.msk [vmem:[%s423 + $0x28] sm:$0xff] %vm482, %v1187
        %1196 = vst.msk [vmem:[%s423 + $0x30] sm:$0xff] %vm482, %v1188
        %1197 = vst.msk [vmem:[%s423 + $0x38] sm:$0xff] %vm482, %v1189
        %s1198 = sand.u32 %s251, 1
        %s1199 = sand.u32 %s251, 1
        %s1200 = smul.addr %s1199, 64
        %s1201 = scalar_lea.vmem [#allocation2], %s1200
        %s1202 = sand.u32 %s277, 1
        %s1203 = sand.u32 %s277, 1
        %s1204 = smul.addr %s1203, 64
        %s1205 = scalar_lea.vmem [#allocation3], %s1204
        // Predicated region
        $region61: #{equivariant_decoder_block.1} parent=59 // pred_check
          %p1206 = pneg %p261
        $region62: #{equivariant_decoder_block.1} parent=59 // pred_check_branch
          %1208 = sbr.rel (%p1206) target = $region64
        $region63: #{equivariant_decoder_block.1} parent=59 // pred_region
          %s1209 = smul.u32 8, %s23
          %s1210 = ssub.s32 20, %s1209
          %p1211 = scmp.lt.s32.totalorder %s1210, 8
          %s1212 = scalar_select %p1211, %s1210, 8
          %s1213 = smul.u32 8, %s1212
          %p1214 = scmp.ne.s32.totalorder 0, %s1213
          %s1215 = smul.addr %s1209, 8
          %s1216 = scalar_lea.vmem %s10, %s1215
          // Predicated region
          $region65: #{equivariant_decoder_block.1} parent=63 // pred_check
            %p1217 = pneg %p1214
          $region66: #{equivariant_decoder_block.1} parent=63 // pred_check_branch
            %1219 = sbr.rel (%p1217) target = $region68
          $region67: #{equivariant_decoder_block.1} parent=63 // pred_region
            // Predicated region
            $region69: #{equivariant_decoder_block.1} parent=67 // pred_check
              _
            $region70: #{equivariant_decoder_block.1} parent=67 // pred_check_branch
              %1221 = sbr.rel (0) target = $region72
            $region71: #{equivariant_decoder_block.1} parent=67 // pred_region
              // Predicated region
              $region91: #{equivariant_decoder_block.1} parent=71 // pred_check
                _
              $region92: #{equivariant_decoder_block.1} parent=71 // pred_check_branch
                %1285 = sbr.rel (0) target = $region94
              $region93: #{equivariant_decoder_block.1} parent=71 // pred_region
                %s1286 = sshrl.u32 %s1212, 3
                // While loop
                $region95: #{equivariant_decoder_block.1} parent=93 // loop_pre_header
                  _
                $region96: #{equivariant_decoder_block.1} parent=93 // loop_header
                  %s1288 = sphi 0, %s1290
                  %p1289 = scmp.ge.s32.totalorder %s1288, %s1286
                  %s1293 = sphi 0, %s1314
                  %s1294 = sphi %s1201, %s1317
                  %s1295 = sphi %s1216, %s1318
                $region97: #{equivariant_decoder_block.1} parent=93 // loop_header_branch
                  %1292 = sbr.rel (%p1289) target = $region101
                $region98: #{equivariant_decoder_block.1} parent=93 // loop_body
                  %v1296 = vld [vmem:[%s1294] sm:$0xff]
                  %1297 = vst [vmem:[%s1295] sm:$0xff] %v1296
                  %v1298 = vld [vmem:[%s1294 + $0x8] sm:$0xff]
                  %1299 = vst [vmem:[%s1295 + $0x8] sm:$0xff] %v1298
                  %v1300 = vld [vmem:[%s1294 + $0x10] sm:$0xff]
                  %1301 = vst [vmem:[%s1295 + $0x10] sm:$0xff] %v1300
                  %v1302 = vld [vmem:[%s1294 + $0x18] sm:$0xff]
                  %1303 = vst [vmem:[%s1295 + $0x18] sm:$0xff] %v1302
                  %v1304 = vld [vmem:[%s1294 + $0x20] sm:$0xff]
                  %1305 = vst [vmem:[%s1295 + $0x20] sm:$0xff] %v1304
                  %v1306 = vld [vmem:[%s1294 + $0x28] sm:$0xff]
                  %1307 = vst [vmem:[%s1295 + $0x28] sm:$0xff] %v1306
                  %v1308 = vld [vmem:[%s1294 + $0x30] sm:$0xff]
                  %1309 = vst [vmem:[%s1295 + $0x30] sm:$0xff] %v1308
                  %v1310 = vld [vmem:[%s1294 + $0x38] sm:$0xff]
                  %1311 = vst [vmem:[%s1295 + $0x38] sm:$0xff] %v1310
                  %s1312 = sadd.s32 1, %s1293
                  %p1313 = scmp.ge.s32.totalorder %s1312, %s1286
                  %s1314 = scalar_select %p1313, 0, %s1312
                  %s1315 = smul.u32 %s1314, 64
                  %s1316 = smul.u32 %s1314, 64
                  %s1317 = scalar_lea.vmem %s1201, %s1315 [#allocation2]
                  %s1318 = scalar_lea.vmem %s1216, %s1316
                $region99: #{equivariant_decoder_block.1} parent=93 // loop_footer
                  %s1290 = sadd.s32 %s1288, 1
                $region100: #{equivariant_decoder_block.1} parent=93 // loop_footer_branch
                  %1287 = sbr.rel target = $region96
                $region101: #{equivariant_decoder_block.1} parent=93 // loop_exit
                  _
                %s1319 = sshrl.u32 %s1212, 3
                %s1320 = sand.u32 %s1212, 7
                %s1321 = smul.u32 %s1319, 8
                %s1322 = smul.u32 8, %s1321
                %s1323 = scalar_lea.vmem %s1201, %s1322 [#allocation2]
                %s1324 = smul.u32 8, %s1321
                %s1325 = scalar_lea.vmem %s1216, %s1324
                // While loop
                $region102: #{equivariant_decoder_block.1} parent=93 // loop_pre_header
                  _
                $region103: #{equivariant_decoder_block.1} parent=93 // loop_header
                  %s1327 = sphi 0, %s1329
                  %p1328 = scmp.ge.s32.totalorder %s1327, %s1320
                  %s1332 = sphi 0, %s1339
                  %s1333 = sphi %s1323, %s1342
                  %s1334 = sphi %s1325, %s1343
                $region104: #{equivariant_decoder_block.1} parent=93 // loop_header_branch
                  %1331 = sbr.rel (%p1328) target = $region108
                $region105: #{equivariant_decoder_block.1} parent=93 // loop_body
                  %v1335 = vld [vmem:[%s1333] sm:$0xff]
                  %1336 = vst [vmem:[%s1334] sm:$0xff] %v1335
                  %s1337 = sadd.s32 1, %s1332
                  %p1338 = scmp.ge.s32.totalorder %s1337, %s1320
                  %s1339 = scalar_select %p1338, 0, %s1337
                  %s1340 = smul.u32 %s1339, 8
                  %s1341 = smul.u32 %s1339, 8
                  %s1342 = scalar_lea.vmem %s1323, %s1340 [#allocation2]
                  %s1343 = scalar_lea.vmem %s1325, %s1341
                $region106: #{equivariant_decoder_block.1} parent=93 // loop_footer
                  %s1329 = sadd.s32 %s1327, 1
                $region107: #{equivariant_decoder_block.1} parent=93 // loop_footer_branch
                  %1326 = sbr.rel target = $region103
                $region108: #{equivariant_decoder_block.1} parent=93 // loop_exit
                  _
              $region94: #{equivariant_decoder_block.1} parent=71 // pred_fallthru
                _
              // Predicated region
              $region109: #{equivariant_decoder_block.1} parent=71 // pred_check
                _
              $region110: #{equivariant_decoder_block.1} parent=71 // pred_check_branch
                %1345 = sbr.rel target = $region112
              $region111: #{equivariant_decoder_block.1} parent=71 // pred_region
                _
              $region112: #{equivariant_decoder_block.1} parent=71 // pred_fallthru
                _
            $region72: #{equivariant_decoder_block.1} parent=67 // pred_fallthru
              _
            // Predicated region
            $region73: #{equivariant_decoder_block.1} parent=67 // pred_check
              _
            $region74: #{equivariant_decoder_block.1} parent=67 // pred_check_branch
              %1223 = sbr.rel target = $region76
            $region75: #{equivariant_decoder_block.1} parent=67 // pred_region
              %s1225 = ssub.s32 256, 1
              %s1226 = sshrl.u32 %s1212, 3
              // While loop
              $region77: #{equivariant_decoder_block.1} parent=75 // loop_pre_header
                _
              $region78: #{equivariant_decoder_block.1} parent=75 // loop_header
                %s1228 = sphi 0, %s1230
                %p1229 = scmp.ge.s32.totalorder %s1228, %s1226
                %s1233 = sphi 0, %s1254
                %s1234 = sphi %s1201, %s1257
                %s1235 = sphi %s1216, %s1258
              $region79: #{equivariant_decoder_block.1} parent=75 // loop_header_branch
                %1232 = sbr.rel (%p1229) target = $region83
              $region80: #{equivariant_decoder_block.1} parent=75 // loop_body
                %v1236 = vld [vmem:[%s1234] sm:%s1225]
                %1237 = vst [vmem:[%s1235] sm:%s1225] %v1236
                %v1238 = vld [vmem:[%s1234 + $0x8] sm:%s1225]
                %1239 = vst [vmem:[%s1235 + $0x8] sm:%s1225] %v1238
                %v1240 = vld [vmem:[%s1234 + $0x10] sm:%s1225]
                %1241 = vst [vmem:[%s1235 + $0x10] sm:%s1225] %v1240
                %v1242 = vld [vmem:[%s1234 + $0x18] sm:%s1225]
                %1243 = vst [vmem:[%s1235 + $0x18] sm:%s1225] %v1242
                %v1244 = vld [vmem:[%s1234 + $0x20] sm:%s1225]
                %1245 = vst [vmem:[%s1235 + $0x20] sm:%s1225] %v1244
                %v1246 = vld [vmem:[%s1234 + $0x28] sm:%s1225]
                %1247 = vst [vmem:[%s1235 + $0x28] sm:%s1225] %v1246
                %v1248 = vld [vmem:[%s1234 + $0x30] sm:%s1225]
                %1249 = vst [vmem:[%s1235 + $0x30] sm:%s1225] %v1248
                %v1250 = vld [vmem:[%s1234 + $0x38] sm:%s1225]
                %1251 = vst [vmem:[%s1235 + $0x38] sm:%s1225] %v1250
                %s1252 = sadd.s32 1, %s1233
                %p1253 = scmp.ge.s32.totalorder %s1252, %s1226
                %s1254 = scalar_select %p1253, 0, %s1252
                %s1255 = smul.u32 %s1254, 64
                %s1256 = smul.u32 %s1254, 64
                %s1257 = scalar_lea.vmem %s1201, %s1255 [#allocation2]
                %s1258 = scalar_lea.vmem %s1216, %s1256
              $region81: #{equivariant_decoder_block.1} parent=75 // loop_footer
                %s1230 = sadd.s32 %s1228, 1
              $region82: #{equivariant_decoder_block.1} parent=75 // loop_footer_branch
                %1227 = sbr.rel target = $region78
              $region83: #{equivariant_decoder_block.1} parent=75 // loop_exit
                _
              %s1259 = sshrl.u32 %s1212, 3
              %s1260 = sand.u32 %s1212, 7
              %s1261 = smul.u32 %s1259, 8
              %s1262 = smul.u32 8, %s1261
              %s1263 = scalar_lea.vmem %s1201, %s1262 [#allocation2]
              %s1264 = smul.u32 8, %s1261
              %s1265 = scalar_lea.vmem %s1216, %s1264
              // While loop
              $region84: #{equivariant_decoder_block.1} parent=75 // loop_pre_header
                _
              $region85: #{equivariant_decoder_block.1} parent=75 // loop_header
                %s1267 = sphi 0, %s1269
                %p1268 = scmp.ge.s32.totalorder %s1267, %s1260
                %s1272 = sphi 0, %s1279
                %s1273 = sphi %s1263, %s1282
                %s1274 = sphi %s1265, %s1283
              $region86: #{equivariant_decoder_block.1} parent=75 // loop_header_branch
                %1271 = sbr.rel (%p1268) target = $region90
              $region87: #{equivariant_decoder_block.1} parent=75 // loop_body
                %v1275 = vld [vmem:[%s1273] sm:%s1225]
                %1276 = vst [vmem:[%s1274] sm:%s1225] %v1275
                %s1277 = sadd.s32 1, %s1272
                %p1278 = scmp.ge.s32.totalorder %s1277, %s1260
                %s1279 = scalar_select %p1278, 0, %s1277
                %s1280 = smul.u32 %s1279, 8
                %s1281 = smul.u32 %s1279, 8
                %s1282 = scalar_lea.vmem %s1263, %s1280 [#allocation2]
                %s1283 = scalar_lea.vmem %s1265, %s1281
              $region88: #{equivariant_decoder_block.1} parent=75 // loop_footer
                %s1269 = sadd.s32 %s1267, 1
              $region89: #{equivariant_decoder_block.1} parent=75 // loop_footer_branch
                %1266 = sbr.rel target = $region85
              $region90: #{equivariant_decoder_block.1} parent=75 // loop_exit
                _
            $region76: #{equivariant_decoder_block.1} parent=67 // pred_fallthru
              _
          $region68: #{equivariant_decoder_block.1} parent=63 // pred_fallthru
            _
          %1346 = vnop
        $region64: #{equivariant_decoder_block.1} parent=59 // pred_fallthru
          _
        // Predicated region
        $region113: #{equivariant_decoder_block.1} parent=59 // pred_check
          %p1347 = pneg %p287
        $region114: #{equivariant_decoder_block.1} parent=59 // pred_check_branch
          %1349 = sbr.rel (%p1347) target = $region116
        $region115: #{equivariant_decoder_block.1} parent=59 // pred_region
          %s1350 = smul.u32 8, %s23
          %s1351 = ssub.s32 20, %s1350
          %p1352 = scmp.lt.s32.totalorder %s1351, 8
          %s1353 = scalar_select %p1352, %s1351, 8
          %s1354 = smul.u32 8, %s1353
          %p1355 = scmp.ne.s32.totalorder 0, %s1354
          %s1356 = smul.addr %s1350, 8
          %s1357 = scalar_lea.vmem %s11, %s1356
          // Predicated region
          $region117: #{equivariant_decoder_block.1} parent=115 // pred_check
            %p1358 = pneg %p1355
          $region118: #{equivariant_decoder_block.1} parent=115 // pred_check_branch
            %1360 = sbr.rel (%p1358) target = $region120
          $region119: #{equivariant_decoder_block.1} parent=115 // pred_region
            // Predicated region
            $region121: #{equivariant_decoder_block.1} parent=119 // pred_check
              _
            $region122: #{equivariant_decoder_block.1} parent=119 // pred_check_branch
              %1362 = sbr.rel (0) target = $region124
            $region123: #{equivariant_decoder_block.1} parent=119 // pred_region
              // Predicated region
              $region143: #{equivariant_decoder_block.1} parent=123 // pred_check
                _
              $region144: #{equivariant_decoder_block.1} parent=123 // pred_check_branch
                %1426 = sbr.rel (0) target = $region146
              $region145: #{equivariant_decoder_block.1} parent=123 // pred_region
                %s1427 = sshrl.u32 %s1353, 3
                // While loop
                $region147: #{equivariant_decoder_block.1} parent=145 // loop_pre_header
                  _
                $region148: #{equivariant_decoder_block.1} parent=145 // loop_header
                  %s1429 = sphi 0, %s1431
                  %p1430 = scmp.ge.s32.totalorder %s1429, %s1427
                  %s1434 = sphi 0, %s1455
                  %s1435 = sphi %s1205, %s1458
                  %s1436 = sphi %s1357, %s1459
                $region149: #{equivariant_decoder_block.1} parent=145 // loop_header_branch
                  %1433 = sbr.rel (%p1430) target = $region153
                $region150: #{equivariant_decoder_block.1} parent=145 // loop_body
                  %v1437 = vld [vmem:[%s1435] sm:$0xff]
                  %1438 = vst [vmem:[%s1436] sm:$0xff] %v1437
                  %v1439 = vld [vmem:[%s1435 + $0x8] sm:$0xff]
                  %1440 = vst [vmem:[%s1436 + $0x8] sm:$0xff] %v1439
                  %v1441 = vld [vmem:[%s1435 + $0x10] sm:$0xff]
                  %1442 = vst [vmem:[%s1436 + $0x10] sm:$0xff] %v1441
                  %v1443 = vld [vmem:[%s1435 + $0x18] sm:$0xff]
                  %1444 = vst [vmem:[%s1436 + $0x18] sm:$0xff] %v1443
                  %v1445 = vld [vmem:[%s1435 + $0x20] sm:$0xff]
                  %1446 = vst [vmem:[%s1436 + $0x20] sm:$0xff] %v1445
                  %v1447 = vld [vmem:[%s1435 + $0x28] sm:$0xff]
                  %1448 = vst [vmem:[%s1436 + $0x28] sm:$0xff] %v1447
                  %v1449 = vld [vmem:[%s1435 + $0x30] sm:$0xff]
                  %1450 = vst [vmem:[%s1436 + $0x30] sm:$0xff] %v1449
                  %v1451 = vld [vmem:[%s1435 + $0x38] sm:$0xff]
                  %1452 = vst [vmem:[%s1436 + $0x38] sm:$0xff] %v1451
                  %s1453 = sadd.s32 1, %s1434
                  %p1454 = scmp.ge.s32.totalorder %s1453, %s1427
                  %s1455 = scalar_select %p1454, 0, %s1453
                  %s1456 = smul.u32 %s1455, 64
                  %s1457 = smul.u32 %s1455, 64
                  %s1458 = scalar_lea.vmem %s1205, %s1456 [#allocation3]
                  %s1459 = scalar_lea.vmem %s1357, %s1457
                $region151: #{equivariant_decoder_block.1} parent=145 // loop_footer
                  %s1431 = sadd.s32 %s1429, 1
                $region152: #{equivariant_decoder_block.1} parent=145 // loop_footer_branch
                  %1428 = sbr.rel target = $region148
                $region153: #{equivariant_decoder_block.1} parent=145 // loop_exit
                  _
                %s1460 = sshrl.u32 %s1353, 3
                %s1461 = sand.u32 %s1353, 7
                %s1462 = smul.u32 %s1460, 8
                %s1463 = smul.u32 8, %s1462
                %s1464 = scalar_lea.vmem %s1205, %s1463 [#allocation3]
                %s1465 = smul.u32 8, %s1462
                %s1466 = scalar_lea.vmem %s1357, %s1465
                // While loop
                $region154: #{equivariant_decoder_block.1} parent=145 // loop_pre_header
                  _
                $region155: #{equivariant_decoder_block.1} parent=145 // loop_header
                  %s1468 = sphi 0, %s1470
                  %p1469 = scmp.ge.s32.totalorder %s1468, %s1461
                  %s1473 = sphi 0, %s1480
                  %s1474 = sphi %s1464, %s1483
                  %s1475 = sphi %s1466, %s1484
                $region156: #{equivariant_decoder_block.1} parent=145 // loop_header_branch
                  %1472 = sbr.rel (%p1469) target = $region160
                $region157: #{equivariant_decoder_block.1} parent=145 // loop_body
                  %v1476 = vld [vmem:[%s1474] sm:$0xff]
                  %1477 = vst [vmem:[%s1475] sm:$0xff] %v1476
                  %s1478 = sadd.s32 1, %s1473
                  %p1479 = scmp.ge.s32.totalorder %s1478, %s1461
                  %s1480 = scalar_select %p1479, 0, %s1478
                  %s1481 = smul.u32 %s1480, 8
                  %s1482 = smul.u32 %s1480, 8
                  %s1483 = scalar_lea.vmem %s1464, %s1481 [#allocation3]
                  %s1484 = scalar_lea.vmem %s1466, %s1482
                $region158: #{equivariant_decoder_block.1} parent=145 // loop_footer
                  %s1470 = sadd.s32 %s1468, 1
                $region159: #{equivariant_decoder_block.1} parent=145 // loop_footer_branch
                  %1467 = sbr.rel target = $region155
                $region160: #{equivariant_decoder_block.1} parent=145 // loop_exit
                  _
              $region146: #{equivariant_decoder_block.1} parent=123 // pred_fallthru
                _
              // Predicated region
              $region161: #{equivariant_decoder_block.1} parent=123 // pred_check
                _
              $region162: #{equivariant_decoder_block.1} parent=123 // pred_check_branch
                %1486 = sbr.rel target = $region164
              $region163: #{equivariant_decoder_block.1} parent=123 // pred_region
                _
              $region164: #{equivariant_decoder_block.1} parent=123 // pred_fallthru
                _
            $region124: #{equivariant_decoder_block.1} parent=119 // pred_fallthru
              _
            // Predicated region
            $region125: #{equivariant_decoder_block.1} parent=119 // pred_check
              _
            $region126: #{equivariant_decoder_block.1} parent=119 // pred_check_branch
              %1364 = sbr.rel target = $region128
            $region127: #{equivariant_decoder_block.1} parent=119 // pred_region
              %s1366 = ssub.s32 256, 1
              %s1367 = sshrl.u32 %s1353, 3
              // While loop
              $region129: #{equivariant_decoder_block.1} parent=127 // loop_pre_header
                _
              $region130: #{equivariant_decoder_block.1} parent=127 // loop_header
                %s1369 = sphi 0, %s1371
                %p1370 = scmp.ge.s32.totalorder %s1369, %s1367
                %s1374 = sphi 0, %s1395
                %s1375 = sphi %s1205, %s1398
                %s1376 = sphi %s1357, %s1399
              $region131: #{equivariant_decoder_block.1} parent=127 // loop_header_branch
                %1373 = sbr.rel (%p1370) target = $region135
              $region132: #{equivariant_decoder_block.1} parent=127 // loop_body
                %v1377 = vld [vmem:[%s1375] sm:%s1366]
                %1378 = vst [vmem:[%s1376] sm:%s1366] %v1377
                %v1379 = vld [vmem:[%s1375 + $0x8] sm:%s1366]
                %1380 = vst [vmem:[%s1376 + $0x8] sm:%s1366] %v1379
                %v1381 = vld [vmem:[%s1375 + $0x10] sm:%s1366]
                %1382 = vst [vmem:[%s1376 + $0x10] sm:%s1366] %v1381
                %v1383 = vld [vmem:[%s1375 + $0x18] sm:%s1366]
                %1384 = vst [vmem:[%s1376 + $0x18] sm:%s1366] %v1383
                %v1385 = vld [vmem:[%s1375 + $0x20] sm:%s1366]
                %1386 = vst [vmem:[%s1376 + $0x20] sm:%s1366] %v1385
                %v1387 = vld [vmem:[%s1375 + $0x28] sm:%s1366]
                %1388 = vst [vmem:[%s1376 + $0x28] sm:%s1366] %v1387
                %v1389 = vld [vmem:[%s1375 + $0x30] sm:%s1366]
                %1390 = vst [vmem:[%s1376 + $0x30] sm:%s1366] %v1389
                %v1391 = vld [vmem:[%s1375 + $0x38] sm:%s1366]
                %1392 = vst [vmem:[%s1376 + $0x38] sm:%s1366] %v1391
                %s1393 = sadd.s32 1, %s1374
                %p1394 = scmp.ge.s32.totalorder %s1393, %s1367
                %s1395 = scalar_select %p1394, 0, %s1393
                %s1396 = smul.u32 %s1395, 64
                %s1397 = smul.u32 %s1395, 64
                %s1398 = scalar_lea.vmem %s1205, %s1396 [#allocation3]
                %s1399 = scalar_lea.vmem %s1357, %s1397
              $region133: #{equivariant_decoder_block.1} parent=127 // loop_footer
                %s1371 = sadd.s32 %s1369, 1
              $region134: #{equivariant_decoder_block.1} parent=127 // loop_footer_branch
                %1368 = sbr.rel target = $region130
              $region135: #{equivariant_decoder_block.1} parent=127 // loop_exit
                _
              %s1400 = sshrl.u32 %s1353, 3
              %s1401 = sand.u32 %s1353, 7
              %s1402 = smul.u32 %s1400, 8
              %s1403 = smul.u32 8, %s1402
              %s1404 = scalar_lea.vmem %s1205, %s1403 [#allocation3]
              %s1405 = smul.u32 8, %s1402
              %s1406 = scalar_lea.vmem %s1357, %s1405
              // While loop
              $region136: #{equivariant_decoder_block.1} parent=127 // loop_pre_header
                _
              $region137: #{equivariant_decoder_block.1} parent=127 // loop_header
                %s1408 = sphi 0, %s1410
                %p1409 = scmp.ge.s32.totalorder %s1408, %s1401
                %s1413 = sphi 0, %s1420
                %s1414 = sphi %s1404, %s1423
                %s1415 = sphi %s1406, %s1424
              $region138: #{equivariant_decoder_block.1} parent=127 // loop_header_branch
                %1412 = sbr.rel (%p1409) target = $region142
              $region139: #{equivariant_decoder_block.1} parent=127 // loop_body
                %v1416 = vld [vmem:[%s1414] sm:%s1366]
                %1417 = vst [vmem:[%s1415] sm:%s1366] %v1416
                %s1418 = sadd.s32 1, %s1413
                %p1419 = scmp.ge.s32.totalorder %s1418, %s1401
                %s1420 = scalar_select %p1419, 0, %s1418
                %s1421 = smul.u32 %s1420, 8
                %s1422 = smul.u32 %s1420, 8
                %s1423 = scalar_lea.vmem %s1404, %s1421 [#allocation3]
                %s1424 = scalar_lea.vmem %s1406, %s1422
              $region140: #{equivariant_decoder_block.1} parent=127 // loop_footer
                %s1410 = sadd.s32 %s1408, 1
              $region141: #{equivariant_decoder_block.1} parent=127 // loop_footer_branch
                %1407 = sbr.rel target = $region137
              $region142: #{equivariant_decoder_block.1} parent=127 // loop_exit
                _
            $region128: #{equivariant_decoder_block.1} parent=119 // pred_fallthru
              _
          $region120: #{equivariant_decoder_block.1} parent=115 // pred_fallthru
            _
          %1487 = vnop
        $region116: #{equivariant_decoder_block.1} parent=59 // pred_fallthru
          _
      $region60: #{equivariant_decoder_block.1} parent=5 // pred_fallthru
        _
      %p1488 = scmp.le.s32.totalorder 2, %s18
      // Predicated region
      $region165: #{equivariant_decoder_block.1} parent=5 // pred_check
        %p1489 = pneg %p1488
      $region166: #{equivariant_decoder_block.1} parent=5 // pred_check_branch
        %1491 = sbr.rel (%p1489) target = $region168
      $region167: #{equivariant_decoder_block.1} parent=5 // pred_region
        %s1492 = ssub.s32 %s18, 2
        // Predicated region
        $region169: #{equivariant_decoder_block.1} parent=167 // pred_check
          %p1493 = pneg %p267
        $region170: #{equivariant_decoder_block.1} parent=167 // pred_check_branch
          %1495 = sbr.rel (%p1493) target = $region172
        $region171: #{equivariant_decoder_block.1} parent=167 // pred_region
          %s1496 = sand.u32 %s252, 1
          %s1497 = sand.u32 %s252, 1
          %s1498 = smul.addr %s1497, 64
          %s1499 = scalar_lea.vmem [#allocation2], %s1498
        $region172: #{equivariant_decoder_block.1} parent=167 // pred_fallthru
          _
        // Predicated region
        $region173: #{equivariant_decoder_block.1} parent=167 // pred_check
          %p1500 = pneg %p293
        $region174: #{equivariant_decoder_block.1} parent=167 // pred_check_branch
          %1502 = sbr.rel (%p1500) target = $region176
        $region175: #{equivariant_decoder_block.1} parent=167 // pred_region
          %s1503 = sand.u32 %s278, 1
          %s1504 = sand.u32 %s278, 1
          %s1505 = smul.addr %s1504, 64
          %s1506 = scalar_lea.vmem [#allocation3], %s1505
        $region176: #{equivariant_decoder_block.1} parent=167 // pred_fallthru
          _
      $region168: #{equivariant_decoder_block.1} parent=5 // pred_fallthru
        _
    $region6: #{equivariant_decoder_block.1} parent=1 // loop_footer
      %s22 = sadd.s32 1, %s18
    $region7: #{equivariant_decoder_block.1} parent=1 // loop_footer_branch
      %17 = sbr.rel target = $region3
    $region8: #{equivariant_decoder_block.1} parent=1 // loop_exit
      _

</llo_original>
